<compile_context>
chip_gen: v6e
topology: v6e:2x2x1
jax: 0.10.0
libtpu: 0.0.40
codegen_flags: <defaults>
</compile_context>

<pallas_src>
import numpy as np
import jax
import jax.numpy as jnp
from jax.experimental import pallas as pl
from jax.experimental.pallas import tpu as pltpu


_PAD = (8, 128)                    # lane-dense tile used for scalar partials
_PART_BLOCK = (1,) + _PAD


# ----------------------------------------------------------------------------
# Kernels
# ----------------------------------------------------------------------------
def _make_multiscale_kernel(num_scales, n_total, n_channels, weights, norm):
    """Fused all-scales loss kernel; one batch element per grid step."""

    def kernel(*refs):
        tgt_ref = refs[0]                                   # (1, C, H, W)
        out_refs = refs[1:1 + num_scales]                   # (1, C, Hs_i, Ws_i)
        ph_refs = refs[1 + num_scales:1 + 2 * num_scales]   # row-pool matrices
        pw_refs = refs[1 + 2 * num_scales:1 + 3 * num_scales]
        loss_ref, epe_ref = refs[1 + 3 * num_scales:]       # (1, 8, 128) each

        # ---- scale 0: pool the full-resolution target once per channel.
        #      div_flow is folded into ph0, so pooled0 == avgpool(div_flow*t, k0).
        ph0 = ph_refs[0][...]                               # (Hs0, H) * div_flow/k0
        pw0 = pw_refs[0][...]                               # (W, Ws0) * 1/k0
        pooled0 = []
        for c in range(n_channels):
            rp = jnp.dot(ph0, tgt_ref[0, c], preferred_element_type=jnp.float32)
            pooled0.append(jnp.dot(rp, pw0, preferred_element_type=jnp.float32))

        loss_acc = jnp.float32(0.0)
        epe_acc = jnp.float32(0.0)

        for i in range(num_scales):
            if i == 0:
                pooled_i = pooled0
            else:
                # Deeper scales re-pool the (already small) scale-0 result by
                # 2**i with tiny matmuls — the full-res target is never re-read.
                ph = ph_refs[i][...]                        # (Hs_i, Hs0)
                pw = pw_refs[i][...]                        # (Ws0, Ws_i)
                pooled_i = [
                    jnp.dot(jnp.dot(ph, pooled0[c],
                                    preferred_element_type=jnp.float32),
                            pw, preferred_element_type=jnp.float32)
                    for c in range(n_channels)
                ]

            # Accumulate |d| and d*d tiles across channels; reduce once.
            abs_tile = None
            sq_tile = None
            for c in range(n_channels):
                d = pooled_i[c] - out_refs[i][0, c]
                s = d * d
                sq_tile = s if sq_tile is None else sq_tile + s
                if norm == 'L1':
                    a = jnp.abs(d)
                    abs_tile = a if abs_tile is None else abs_tile + a

            hs, ws = sq_tile.shape
            w_i = weights[i]
            epe_sum = jnp.sum(jnp.sqrt(sq_tile))
            epe_term = epe_sum * (w_i / float(n_total * hs * ws))
            if norm == 'L1':
                loss_term = jnp.sum(abs_tile) * (
                    w_i / float(n_total * n_channels * hs * ws))
            else:   # 'L2' == per-pixel channel-norm mean == EPE
                loss_term = epe_term
            loss_acc = loss_acc + loss_term
            epe_acc = epe_acc + epe_term

        # Lane-dense scalar partials (unmasked full-tile stores).
        loss_ref[...] = jnp.full(_PART_BLOCK, loss_acc, dtype=jnp.float32)
        epe_ref[...] = jnp.full(_PART_BLOCK, epe_acc, dtype=jnp.float32)

    return kernel


def _make_pair_kernel(n_total, n_channels, norm):
    """Non-tuple branch: direct L1 / EPE between output and target."""

    def kernel(out_ref, tgt_ref, loss_ref, epe_ref):
        abs_tile = None
        sq_tile = None
        for c in range(n_channels):
            d = tgt_ref[0, c] - out_ref[0, c]
            s = d * d
            sq_tile = s if sq_tile is None else sq_tile + s
            if norm == 'L1':
                a = jnp.abs(d)
                abs_tile = a if abs_tile is None else abs_tile + a
        h, w = sq_tile.shape
        epe = jnp.sum(jnp.sqrt(sq_tile)) * (1.0 / float(n_total * h * w))
        if norm == 'L1':
            loss = jnp.sum(abs_tile) * (1.0 / float(n_total * n_channels * h * w))
        else:
            loss = epe
        loss_ref[...] = jnp.full(_PART_BLOCK, loss, dtype=jnp.float32)
        epe_ref[...] = jnp.full(_PART_BLOCK, epe, dtype=jnp.float32)

    return kernel


# ----------------------------------------------------------------------------
# Pallas-call wrappers
# ----------------------------------------------------------------------------
def _multiscale_loss(outputs, target, ph_mats, pw_mats, weights, norm):
    N, C, H, W = target.shape
    num_scales = len(outputs)
    kernel = _make_multiscale_kernel(num_scales, N, C, tuple(weights), norm)

    in_specs = [pl.BlockSpec((1, C, H, W), lambda n: (n, 0, 0, 0))]
    for o in outputs:
        hs, ws = o.shape[2], o.shape[3]
        in_specs.append(pl.BlockSpec((1, C, hs, ws), lambda n: (n, 0, 0, 0)))
    for m in tuple(ph_mats) + tuple(pw_mats):
        in_specs.append(pl.BlockSpec(m.shape, lambda n: (0, 0)))

    part_spec = pl.BlockSpec(_PART_BLOCK, lambda n: (n, 0, 0))
    part_shape = jax.ShapeDtypeStruct((N,) + _PAD, jnp.float32)

    loss_parts, epe_parts = pl.pallas_call(
        kernel,
        grid=(N,),
        in_specs=in_specs,
        out_specs=(part_spec, part_spec),
        out_shape=(part_shape, part_shape),
        compiler_params=pltpu.CompilerParams(
            dimension_semantics=("parallel",),
            vmem_limit_bytes=32 * 1024 * 1024),
    )(target, *outputs, *ph_mats, *pw_mats)

    # Per-batch-element partials -> final scalars (tiny host-side reduction).
    return jnp.sum(loss_parts[:, 0, 0]), jnp.sum(epe_parts[:, 0, 0])


def _pair_loss(output, target, norm):
    N, C, H, W = output.shape
    kernel = _make_pair_kernel(N, C, norm)
    blk = pl.BlockSpec((1, C, H, W), lambda n: (n, 0, 0, 0))
    part_spec = pl.BlockSpec(_PART_BLOCK, lambda n: (n, 0, 0))
    part_shape = jax.ShapeDtypeStruct((N,) + _PAD, jnp.float32)

    loss_parts, epe_parts = pl.pallas_call(
        kernel,
        grid=(N,),
        in_specs=[blk, blk],
        out_specs=(part_spec, part_spec),
        out_shape=(part_shape, part_shape),
        compiler_params=pltpu.CompilerParams(
            dimension_semantics=("parallel",),
            vmem_limit_bytes=32 * 1024 * 1024),
    )(output, target)
    return jnp.sum(loss_parts[:, 0, 0]), jnp.sum(epe_parts[:, 0, 0])


# ----------------------------------------------------------------------------
# MultiScale module (JAX / Pallas version)
# ----------------------------------------------------------------------------
class MultiScale:
    def __init__(self, args=None, startScale=4, numScales=5,
                 l_weight=0.32, norm='L1'):
        self.startScale = startScale
        self.numScales = numScales
        self.loss_weights = [l_weight / 2 ** s for s in range(numScales)]
        self.args = args                       # unused (metadata only)
        self.l_type = norm                     # 'L1' or 'L2'
        self.div_flow = 0.05
        self.loss_labels = (['MultiScale-' + self.l_type, 'EPE'],)
        assert len(self.loss_weights) == self.numScales
        self._pool_cache = {}                  # pooling matrices, built once

    def _pool_mats(self, H, W):
        key = (H, W)
        if key not in self._pool_cache:
            k0 = self.startScale
            deepest = k0 * 2 ** (self.numScales - 1)
            # TODO(synk): no equivalent of AvgPool2d border truncation; require exact divisibility.
            assert H % deepest == 0 and W % deepest == 0
            Hs0, Ws0 = H // k0, W // k0
            # scale 0 pools the full-res target; div_flow folded into the row matrix.
            ph0 = np.repeat(np.eye(Hs0, dtype=np.float32), k0, axis=1) * (self.div_flow / k0)
            pw0 = np.repeat(np.eye(Ws0, dtype=np.float32), k0, axis=0) / float(k0)
            ph_mats = [jnp.asarray(ph0)]
            pw_mats = [jnp.asarray(pw0)]
            for i in range(1, self.numScales):
                f = 2 ** i
                Hs, Ws = Hs0 // f, Ws0 // f
                ph = np.repeat(np.eye(Hs, dtype=np.float32), f, axis=1) / float(f)  # (Hs_i, Hs0)
                pw = np.repeat(np.eye(Ws, dtype=np.float32), f, axis=0) / float(f)  # (Ws0, Ws_i)
                ph_mats.append(jnp.asarray(ph))
                pw_mats.append(jnp.asarray(pw))
            self._pool_cache[key] = (tuple(ph_mats), tuple(pw_mats))
        return self._pool_cache[key]

    def __call__(self, output, target):
        if isinstance(output, (tuple, list)):
            H, W = target.shape[-2], target.shape[-1]
            ph_mats, pw_mats = self._pool_mats(H, W)
            lossvalue, epevalue = _multiscale_loss(
                tuple(output), target, ph_mats, pw_mats,
                self.loss_weights, self.l_type)
            return [lossvalue, epevalue]
        else:
            lossvalue, epevalue = _pair_loss(output, target, self.l_type)
            return [lossvalue, epevalue]


# ----------------------------------------------------------------------------
# Pure-JAX reference (for verification only)
# ----------------------------------------------------------------------------
def _ref_forward(output, target, startScale=4, numScales=5,
                 l_weight=0.32, norm='L1', div_flow=0.05):
    weights = [l_weight / 2 ** s for s in range(numScales)]
    t = div_flow * target
    loss, epe = 0.0, 0.0
    N, C, H, W = t.shape
    for i, o in enumerate(output):
        k = startScale * 2 ** i
        tp = t.reshape(N, C, H // k, k, W // k, k).mean(axis=(3, 5))
        d = tp - o
        epe_i = jnp.mean(jnp.sqrt(jnp.sum(d * d, axis=1)))
        l1_i = jnp.mean(jnp.abs(o - tp))
        li = l1_i if norm == 'L1' else epe_i
        loss = loss + li * weights[i]
        epe = epe + epe_i * weights[i]
    return loss, epe


# ----------------------------------------------------------------------------
if __name__ == "__main__":
    key = jax.random.PRNGKey(0)
    N, C, H, W = 2, 2, 64, 64          # flow has 2 channels; 64 so the deepest
    startScale, numScales = 4, 5       # scale (pool 64) still divides evenly

    keys = jax.random.split(key, numScales + 2)
    target = jax.random.normal(keys[0], (N, C, H, W), jnp.float32)
    output = tuple(
        jax.random.normal(
            keys[1 + i],
            (N, C, H // (startScale * 2 ** i), W // (startScale * 2 ** i)),
            jnp.float32)
        for i in range(numScales))

    model = MultiScale(args=None)

    # --- tuple branch (multi-scale pyramid) ---
    lossvalue, epevalue = model(output, target)
    lossvalue = jax.block_until_ready(lossvalue)
    epevalue = jax.block_until_ready(epevalue)

    ref_loss, ref_epe = _ref_forward(output, target)
    np.testing.assert_allclose(float(lossvalue), float(ref_loss), rtol=2e-2, atol=1e-3)
    np.testing.assert_allclose(float(epevalue), float(ref_epe), rtol=2e-2, atol=1e-3)

    # --- non-tuple branch ---
    out_pair = jax.random.normal(keys[numScales + 1], (N, C, H, W), jnp.float32)
    loss_p, epe_p = model(out_pair, target)
    loss_p = jax.block_until_ready(loss_p)
    epe_p = jax.block_until_ready(epe_p)

    d = out_pair - target
    ref_l1 = jnp.mean(jnp.abs(d))
    ref_epe_p = jnp.mean(jnp.sqrt(jnp.sum(d * d, axis=1)))
    np.testing.assert_allclose(float(loss_p), float(ref_l1), rtol=2e-2, atol=1e-3)
    np.testing.assert_allclose(float(epe_p), float(ref_epe_p), rtol=2e-2, atol=1e-3)

    print("KERNEL_OK")
</pallas_src>

<mosaic_0001>
module attributes {stable_mosaic.version = 11 : i64} {
  func.func @kernel(%arg0: i32, %arg1: memref<1x2x64x64xf32, #tpu.memory_space<vmem>>, %arg2: memref<1x2x16x16xf32, #tpu.memory_space<vmem>>, %arg3: memref<1x2x8x8xf32, #tpu.memory_space<vmem>>, %arg4: memref<1x2x4x4xf32, #tpu.memory_space<vmem>>, %arg5: memref<1x2x2x2xf32, #tpu.memory_space<vmem>>, %arg6: memref<1x2x1x1xf32, #tpu.memory_space<vmem>>, %arg7: memref<16x64xf32, #tpu.memory_space<vmem>>, %arg8: memref<8x16xf32, #tpu.memory_space<vmem>>, %arg9: memref<4x16xf32, #tpu.memory_space<vmem>>, %arg10: memref<2x16xf32, #tpu.memory_space<vmem>>, %arg11: memref<1x16xf32, #tpu.memory_space<vmem>>, %arg12: memref<64x16xf32, #tpu.memory_space<vmem>>, %arg13: memref<16x8xf32, #tpu.memory_space<vmem>>, %arg14: memref<16x4xf32, #tpu.memory_space<vmem>>, %arg15: memref<16x2xf32, #tpu.memory_space<vmem>>, %arg16: memref<16x1xf32, #tpu.memory_space<vmem>>, %arg17: memref<1x8x128xf32, #tpu.memory_space<vmem>>, %arg18: memref<1x8x128xf32, #tpu.memory_space<vmem>>) attributes {dimension_semantics = [#tpu.dimension_semantics<parallel>], iteration_bounds = array<i64: 2>, scalar_prefetch = 0 : i64, scratch_operands = 0 : i64, tpu.core_type = #tpu.core_type<tc>, window_params = [{transform_indices = @transform_0, window_bounds = array<i64: 1, 2, 64, 64>}, {transform_indices = @transform_1, window_bounds = array<i64: 1, 2, 16, 16>}, {transform_indices = @transform_2, window_bounds = array<i64: 1, 2, 8, 8>}, {transform_indices = @transform_3, window_bounds = array<i64: 1, 2, 4, 4>}, {transform_indices = @transform_4, window_bounds = array<i64: 1, 2, 2, 2>}, {transform_indices = @transform_5, window_bounds = array<i64: 1, 2, 1, 1>}, {pipeline_mode = #tpu.pipeline_mode<synchronous>, transform_indices = @transform_6, window_bounds = array<i64: 16, 64>}, {pipeline_mode = #tpu.pipeline_mode<synchronous>, transform_indices = @transform_7, window_bounds = array<i64: 8, 16>}, {pipeline_mode = #tpu.pipeline_mode<synchronous>, transform_indices = @transform_8, window_bounds = array<i64: 4, 16>}, {pipeline_mode = #tpu.pipeline_mode<synchronous>, transform_indices = @transform_9, window_bounds = array<i64: 2, 16>}, {pipeline_mode = #tpu.pipeline_mode<synchronous>, transform_indices = @transform_10, window_bounds = array<i64: 1, 16>}, {pipeline_mode = #tpu.pipeline_mode<synchronous>, transform_indices = @transform_11, window_bounds = array<i64: 64, 16>}, {pipeline_mode = #tpu.pipeline_mode<synchronous>, transform_indices = @transform_12, window_bounds = array<i64: 16, 8>}, {pipeline_mode = #tpu.pipeline_mode<synchronous>, transform_indices = @transform_13, window_bounds = array<i64: 16, 4>}, {pipeline_mode = #tpu.pipeline_mode<synchronous>, transform_indices = @transform_14, window_bounds = array<i64: 16, 2>}, {pipeline_mode = #tpu.pipeline_mode<synchronous>, transform_indices = @transform_15, window_bounds = array<i64: 16, 1>}, {transform_indices = @transform_16, window_bounds = array<i64: 1, 8, 128>}, {transform_indices = @transform_17, window_bounds = array<i64: 1, 8, 128>}]} {
    %c0 = arith.constant 0 : index
    %c0_0 = arith.constant 0 : index
    %0 = vector.load %arg7[%c0, %c0_0] : memref<16x64xf32, #tpu.memory_space<vmem>>, vector<16x64xf32>
    %c0_1 = arith.constant 0 : index
    %c0_2 = arith.constant 0 : index
    %1 = vector.load %arg12[%c0_1, %c0_2] : memref<64x16xf32, #tpu.memory_space<vmem>>, vector<64x16xf32>
    %c0_3 = arith.constant 0 : index
    %c0_4 = arith.constant 0 : index
    %c0_5 = arith.constant 0 : index
    %c0_6 = arith.constant 0 : index
    %2 = vector.load %arg1[%c0_3, %c0_4, %c0_5, %c0_6] : memref<1x2x64x64xf32, #tpu.memory_space<vmem>>, vector<1x1x64x64xf32>
    %3 = vector.shape_cast %2 : vector<1x1x64x64xf32> to vector<64x64xf32>
    %cst = arith.constant dense<0.000000e+00> : vector<16x64xf32>
    %4 = tpu.matmul %0, %3, %cst {dimension_numbers = #tpu.dot_dimension_numbers<[1], [0], [0], [1], [0, 0, 1, 1], [], []>} : vector<16x64xf32>, vector<64x64xf32>, vector<16x64xf32> -> vector<16x64xf32>
    %cst_7 = arith.constant dense<0.000000e+00> : vector<16x16xf32>
    %5 = tpu.matmul %4, %1, %cst_7 {dimension_numbers = #tpu.dot_dimension_numbers<[1], [0], [0], [1], [0, 0, 1, 1], [], []>} : vector<16x64xf32>, vector<64x16xf32>, vector<16x16xf32> -> vector<16x16xf32>
    %c0_8 = arith.constant 0 : index
    %c1 = arith.constant 1 : index
    %c0_9 = arith.constant 0 : index
    %c0_10 = arith.constant 0 : index
    %6 = vector.load %arg1[%c0_8, %c1, %c0_9, %c0_10] : memref<1x2x64x64xf32, #tpu.memory_space<vmem>>, vector<1x1x64x64xf32>
    %7 = vector.shape_cast %6 : vector<1x1x64x64xf32> to vector<64x64xf32>
    %cst_11 = arith.constant dense<0.000000e+00> : vector<16x64xf32>
    %8 = tpu.matmul %0, %7, %cst_11 {dimension_numbers = #tpu.dot_dimension_numbers<[1], [0], [0], [1], [0, 0, 1, 1], [], []>} : vector<16x64xf32>, vector<64x64xf32>, vector<16x64xf32> -> vector<16x64xf32>
    %cst_12 = arith.constant dense<0.000000e+00> : vector<16x16xf32>
    %9 = tpu.matmul %8, %1, %cst_12 {dimension_numbers = #tpu.dot_dimension_numbers<[1], [0], [0], [1], [0, 0, 1, 1], [], []>} : vector<16x64xf32>, vector<64x16xf32>, vector<16x16xf32> -> vector<16x16xf32>
    %c0_13 = arith.constant 0 : index
    %c0_14 = arith.constant 0 : index
    %c0_15 = arith.constant 0 : index
    %c0_16 = arith.constant 0 : index
    %10 = vector.load %arg2[%c0_13, %c0_14, %c0_15, %c0_16] : memref<1x2x16x16xf32, #tpu.memory_space<vmem>>, vector<1x1x16x16xf32>
    %11 = vector.shape_cast %10 : vector<1x1x16x16xf32> to vector<16x16xf32>
    %12 = arith.subf %5, %11 : vector<16x16xf32>
    %13 = arith.mulf %12, %12 : vector<16x16xf32>
    %14 = math.absf %12 : vector<16x16xf32>
    %c0_17 = arith.constant 0 : index
    %c1_18 = arith.constant 1 : index
    %c0_19 = arith.constant 0 : index
    %c0_20 = arith.constant 0 : index
    %15 = vector.load %arg2[%c0_17, %c1_18, %c0_19, %c0_20] : memref<1x2x16x16xf32, #tpu.memory_space<vmem>>, vector<1x1x16x16xf32>
    %16 = vector.shape_cast %15 : vector<1x1x16x16xf32> to vector<16x16xf32>
    %17 = arith.subf %9, %16 : vector<16x16xf32>
    %18 = arith.mulf %17, %17 : vector<16x16xf32>
    %19 = arith.addf %13, %18 : vector<16x16xf32>
    %20 = math.absf %17 : vector<16x16xf32>
    %21 = arith.addf %14, %20 : vector<16x16xf32>
    %22 = math.sqrt %19 : vector<16x16xf32>
    %23 = vector.shape_cast %22 : vector<16x16xf32> to vector<1x16x16xf32>
    %cst_21 = arith.constant dense<0.000000e+00> : vector<1xf32>
    %24 = vector.multi_reduction <add>, %23, %cst_21 [1, 2] : vector<1x16x16xf32> to vector<1xf32>
    %25 = vector.shape_cast %24 : vector<1xf32> to vector<1x1x1xf32>
    %26 = vector.extract %25[0, 0, 0] : f32 from vector<1x1x1xf32>
    %cst_22 = arith.constant 6.250000e-04 : f32
    %27 = arith.mulf %26, %cst_22 : f32
    %28 = vector.shape_cast %21 : vector<16x16xf32> to vector<1x16x16xf32>
    %cst_23 = arith.constant dense<0.000000e+00> : vector<1xf32>
    %29 = vector.multi_reduction <add>, %28, %cst_23 [1, 2] : vector<1x16x16xf32> to vector<1xf32>
    %30 = vector.shape_cast %29 : vector<1xf32> to vector<1x1x1xf32>
    %31 = vector.extract %30[0, 0, 0] : f32 from vector<1x1x1xf32>
    %cst_24 = arith.constant 3.125000e-04 : f32
    %32 = arith.mulf %31, %cst_24 : f32
    %cst_25 = arith.constant 0.000000e+00 : f32
    %33 = arith.addf %cst_25, %32 : f32
    %cst_26 = arith.constant 0.000000e+00 : f32
    %34 = arith.addf %cst_26, %27 : f32
    %c0_27 = arith.constant 0 : index
    %c0_28 = arith.constant 0 : index
    %35 = vector.load %arg8[%c0_27, %c0_28] : memref<8x16xf32, #tpu.memory_space<vmem>>, vector<8x16xf32>
    %c0_29 = arith.constant 0 : index
    %c0_30 = arith.constant 0 : index
    %36 = vector.load %arg13[%c0_29, %c0_30] : memref<16x8xf32, #tpu.memory_space<vmem>>, vector<16x8xf32>
    %cst_31 = arith.constant dense<0.000000e+00> : vector<8x16xf32>
    %37 = tpu.matmul %35, %5, %cst_31 {dimension_numbers = #tpu.dot_dimension_numbers<[1], [0], [0], [1], [0, 0, 1, 1], [], []>} : vector<8x16xf32>, vector<16x16xf32>, vector<8x16xf32> -> vector<8x16xf32>
    %cst_32 = arith.constant dense<0.000000e+00> : vector<8x8xf32>
    %38 = tpu.matmul %37, %36, %cst_32 {dimension_numbers = #tpu.dot_dimension_numbers<[1], [0], [0], [1], [0, 0, 1, 1], [], []>} : vector<8x16xf32>, vector<16x8xf32>, vector<8x8xf32> -> vector<8x8xf32>
    %cst_33 = arith.constant dense<0.000000e+00> : vector<8x16xf32>
    %39 = tpu.matmul %35, %9, %cst_33 {dimension_numbers = #tpu.dot_dimension_numbers<[1], [0], [0], [1], [0, 0, 1, 1], [], []>} : vector<8x16xf32>, vector<16x16xf32>, vector<8x16xf32> -> vector<8x16xf32>
    %cst_34 = arith.constant dense<0.000000e+00> : vector<8x8xf32>
    %40 = tpu.matmul %39, %36, %cst_34 {dimension_numbers = #tpu.dot_dimension_numbers<[1], [0], [0], [1], [0, 0, 1, 1], [], []>} : vector<8x16xf32>, vector<16x8xf32>, vector<8x8xf32> -> vector<8x8xf32>
    %c0_35 = arith.constant 0 : index
    %c0_36 = arith.constant 0 : index
    %c0_37 = arith.constant 0 : index
    %c0_38 = arith.constant 0 : index
    %41 = vector.load %arg3[%c0_35, %c0_36, %c0_37, %c0_38] : memref<1x2x8x8xf32, #tpu.memory_space<vmem>>, vector<1x1x8x8xf32>
    %42 = vector.shape_cast %41 : vector<1x1x8x8xf32> to vector<8x8xf32>
    %43 = arith.subf %38, %42 : vector<8x8xf32>
    %44 = arith.mulf %43, %43 : vector<8x8xf32>
    %45 = math.absf %43 : vector<8x8xf32>
    %c0_39 = arith.constant 0 : index
    %c1_40 = arith.constant 1 : index
    %c0_41 = arith.constant 0 : index
    %c0_42 = arith.constant 0 : index
    %46 = vector.load %arg3[%c0_39, %c1_40, %c0_41, %c0_42] : memref<1x2x8x8xf32, #tpu.memory_space<vmem>>, vector<1x1x8x8xf32>
    %47 = vector.shape_cast %46 : vector<1x1x8x8xf32> to vector<8x8xf32>
    %48 = arith.subf %40, %47 : vector<8x8xf32>
    %49 = arith.mulf %48, %48 : vector<8x8xf32>
    %50 = arith.addf %44, %49 : vector<8x8xf32>
    %51 = math.absf %48 : vector<8x8xf32>
    %52 = arith.addf %45, %51 : vector<8x8xf32>
    %53 = math.sqrt %50 : vector<8x8xf32>
    %54 = vector.shape_cast %53 : vector<8x8xf32> to vector<1x8x8xf32>
    %cst_43 = arith.constant dense<0.000000e+00> : vector<1xf32>
    %55 = vector.multi_reduction <add>, %54, %cst_43 [1, 2] : vector<1x8x8xf32> to vector<1xf32>
    %56 = vector.shape_cast %55 : vector<1xf32> to vector<1x1x1xf32>
    %57 = vector.extract %56[0, 0, 0] : f32 from vector<1x1x1xf32>
    %cst_44 = arith.constant 1.250000e-03 : f32
    %58 = arith.mulf %57, %cst_44 : f32
    %59 = vector.shape_cast %52 : vector<8x8xf32> to vector<1x8x8xf32>
    %cst_45 = arith.constant dense<0.000000e+00> : vector<1xf32>
    %60 = vector.multi_reduction <add>, %59, %cst_45 [1, 2] : vector<1x8x8xf32> to vector<1xf32>
    %61 = vector.shape_cast %60 : vector<1xf32> to vector<1x1x1xf32>
    %62 = vector.extract %61[0, 0, 0] : f32 from vector<1x1x1xf32>
    %cst_46 = arith.constant 6.250000e-04 : f32
    %63 = arith.mulf %62, %cst_46 : f32
    %64 = arith.addf %33, %63 : f32
    %65 = arith.addf %34, %58 : f32
    %c0_47 = arith.constant 0 : index
    %c0_48 = arith.constant 0 : index
    %66 = vector.load %arg9[%c0_47, %c0_48] : memref<4x16xf32, #tpu.memory_space<vmem>>, vector<4x16xf32>
    %c0_49 = arith.constant 0 : index
    %c0_50 = arith.constant 0 : index
    %67 = vector.load %arg14[%c0_49, %c0_50] : memref<16x4xf32, #tpu.memory_space<vmem>>, vector<16x4xf32>
    %cst_51 = arith.constant dense<0.000000e+00> : vector<4x16xf32>
    %68 = tpu.matmul %66, %5, %cst_51 {dimension_numbers = #tpu.dot_dimension_numbers<[1], [0], [0], [1], [0, 0, 1, 1], [], []>} : vector<4x16xf32>, vector<16x16xf32>, vector<4x16xf32> -> vector<4x16xf32>
    %cst_52 = arith.constant dense<0.000000e+00> : vector<4x4xf32>
    %69 = tpu.matmul %68, %67, %cst_52 {dimension_numbers = #tpu.dot_dimension_numbers<[1], [0], [0], [1], [0, 0, 1, 1], [], []>} : vector<4x16xf32>, vector<16x4xf32>, vector<4x4xf32> -> vector<4x4xf32>
    %cst_53 = arith.constant dense<0.000000e+00> : vector<4x16xf32>
    %70 = tpu.matmul %66, %9, %cst_53 {dimension_numbers = #tpu.dot_dimension_numbers<[1], [0], [0], [1], [0, 0, 1, 1], [], []>} : vector<4x16xf32>, vector<16x16xf32>, vector<4x16xf32> -> vector<4x16xf32>
    %cst_54 = arith.constant dense<0.000000e+00> : vector<4x4xf32>
    %71 = tpu.matmul %70, %67, %cst_54 {dimension_numbers = #tpu.dot_dimension_numbers<[1], [0], [0], [1], [0, 0, 1, 1], [], []>} : vector<4x16xf32>, vector<16x4xf32>, vector<4x4xf32> -> vector<4x4xf32>
    %c0_55 = arith.constant 0 : index
    %c0_56 = arith.constant 0 : index
    %c0_57 = arith.constant 0 : index
    %c0_58 = arith.constant 0 : index
    %72 = vector.load %arg4[%c0_55, %c0_56, %c0_57, %c0_58] : memref<1x2x4x4xf32, #tpu.memory_space<vmem>>, vector<1x1x4x4xf32>
    %73 = vector.shape_cast %72 : vector<1x1x4x4xf32> to vector<4x4xf32>
    %74 = arith.subf %69, %73 : vector<4x4xf32>
    %75 = arith.mulf %74, %74 : vector<4x4xf32>
    %76 = math.absf %74 : vector<4x4xf32>
    %c0_59 = arith.constant 0 : index
    %c1_60 = arith.constant 1 : index
    %c0_61 = arith.constant 0 : index
    %c0_62 = arith.constant 0 : index
    %77 = vector.load %arg4[%c0_59, %c1_60, %c0_61, %c0_62] : memref<1x2x4x4xf32, #tpu.memory_space<vmem>>, vector<1x1x4x4xf32>
    %78 = vector.shape_cast %77 : vector<1x1x4x4xf32> to vector<4x4xf32>
    %79 = arith.subf %71, %78 : vector<4x4xf32>
    %80 = arith.mulf %79, %79 : vector<4x4xf32>
    %81 = arith.addf %75, %80 : vector<4x4xf32>
    %82 = math.absf %79 : vector<4x4xf32>
    %83 = arith.addf %76, %82 : vector<4x4xf32>
    %84 = math.sqrt %81 : vector<4x4xf32>
    %85 = vector.shape_cast %84 : vector<4x4xf32> to vector<1x4x4xf32>
    %cst_63 = arith.constant dense<0.000000e+00> : vector<1xf32>
    %86 = vector.multi_reduction <add>, %85, %cst_63 [1, 2] : vector<1x4x4xf32> to vector<1xf32>
    %87 = vector.shape_cast %86 : vector<1xf32> to vector<1x1x1xf32>
    %88 = vector.extract %87[0, 0, 0] : f32 from vector<1x1x1xf32>
    %cst_64 = arith.constant 2.500000e-03 : f32
    %89 = arith.mulf %88, %cst_64 : f32
    %90 = vector.shape_cast %83 : vector<4x4xf32> to vector<1x4x4xf32>
    %cst_65 = arith.constant dense<0.000000e+00> : vector<1xf32>
    %91 = vector.multi_reduction <add>, %90, %cst_65 [1, 2] : vector<1x4x4xf32> to vector<1xf32>
    %92 = vector.shape_cast %91 : vector<1xf32> to vector<1x1x1xf32>
    %93 = vector.extract %92[0, 0, 0] : f32 from vector<1x1x1xf32>
    %cst_66 = arith.constant 1.250000e-03 : f32
    %94 = arith.mulf %93, %cst_66 : f32
    %95 = arith.addf %64, %94 : f32
    %96 = arith.addf %65, %89 : f32
    %c0_67 = arith.constant 0 : index
    %c0_68 = arith.constant 0 : index
    %97 = vector.load %arg10[%c0_67, %c0_68] : memref<2x16xf32, #tpu.memory_space<vmem>>, vector<2x16xf32>
    %c0_69 = arith.constant 0 : index
    %c0_70 = arith.constant 0 : index
    %98 = vector.load %arg15[%c0_69, %c0_70] : memref<16x2xf32, #tpu.memory_space<vmem>>, vector<16x2xf32>
    %cst_71 = arith.constant dense<0.000000e+00> : vector<2x16xf32>
    %99 = tpu.matmul %97, %5, %cst_71 {dimension_numbers = #tpu.dot_dimension_numbers<[1], [0], [0], [1], [0, 0, 1, 1], [], []>} : vector<2x16xf32>, vector<16x16xf32>, vector<2x16xf32> -> vector<2x16xf32>
    %cst_72 = arith.constant dense<0.000000e+00> : vector<2x2xf32>
    %100 = tpu.matmul %99, %98, %cst_72 {dimension_numbers = #tpu.dot_dimension_numbers<[1], [0], [0], [1], [0, 0, 1, 1], [], []>} : vector<2x16xf32>, vector<16x2xf32>, vector<2x2xf32> -> vector<2x2xf32>
    %cst_73 = arith.constant dense<0.000000e+00> : vector<2x16xf32>
    %101 = tpu.matmul %97, %9, %cst_73 {dimension_numbers = #tpu.dot_dimension_numbers<[1], [0], [0], [1], [0, 0, 1, 1], [], []>} : vector<2x16xf32>, vector<16x16xf32>, vector<2x16xf32> -> vector<2x16xf32>
    %cst_74 = arith.constant dense<0.000000e+00> : vector<2x2xf32>
    %102 = tpu.matmul %101, %98, %cst_74 {dimension_numbers = #tpu.dot_dimension_numbers<[1], [0], [0], [1], [0, 0, 1, 1], [], []>} : vector<2x16xf32>, vector<16x2xf32>, vector<2x2xf32> -> vector<2x2xf32>
    %c0_75 = arith.constant 0 : index
    %c0_76 = arith.constant 0 : index
    %c0_77 = arith.constant 0 : index
    %c0_78 = arith.constant 0 : index
    %103 = vector.load %arg5[%c0_75, %c0_76, %c0_77, %c0_78] : memref<1x2x2x2xf32, #tpu.memory_space<vmem>>, vector<1x1x2x2xf32>
    %104 = vector.shape_cast %103 : vector<1x1x2x2xf32> to vector<2x2xf32>
    %105 = arith.subf %100, %104 : vector<2x2xf32>
    %106 = arith.mulf %105, %105 : vector<2x2xf32>
    %107 = math.absf %105 : vector<2x2xf32>
    %c0_79 = arith.constant 0 : index
    %c1_80 = arith.constant 1 : index
    %c0_81 = arith.constant 0 : index
    %c0_82 = arith.constant 0 : index
    %108 = vector.load %arg5[%c0_79, %c1_80, %c0_81, %c0_82] : memref<1x2x2x2xf32, #tpu.memory_space<vmem>>, vector<1x1x2x2xf32>
    %109 = vector.shape_cast %108 : vector<1x1x2x2xf32> to vector<2x2xf32>
    %110 = arith.subf %102, %109 : vector<2x2xf32>
    %111 = arith.mulf %110, %110 : vector<2x2xf32>
    %112 = arith.addf %106, %111 : vector<2x2xf32>
    %113 = math.absf %110 : vector<2x2xf32>
    %114 = arith.addf %107, %113 : vector<2x2xf32>
    %115 = math.sqrt %112 : vector<2x2xf32>
    %116 = vector.shape_cast %115 : vector<2x2xf32> to vector<1x2x2xf32>
    %cst_83 = arith.constant dense<0.000000e+00> : vector<1xf32>
    %117 = vector.multi_reduction <add>, %116, %cst_83 [1, 2] : vector<1x2x2xf32> to vector<1xf32>
    %118 = vector.shape_cast %117 : vector<1xf32> to vector<1x1x1xf32>
    %119 = vector.extract %118[0, 0, 0] : f32 from vector<1x1x1xf32>
    %cst_84 = arith.constant 5.000000e-03 : f32
    %120 = arith.mulf %119, %cst_84 : f32
    %121 = vector.shape_cast %114 : vector<2x2xf32> to vector<1x2x2xf32>
    %cst_85 = arith.constant dense<0.000000e+00> : vector<1xf32>
    %122 = vector.multi_reduction <add>, %121, %cst_85 [1, 2] : vector<1x2x2xf32> to vector<1xf32>
    %123 = vector.shape_cast %122 : vector<1xf32> to vector<1x1x1xf32>
    %124 = vector.extract %123[0, 0, 0] : f32 from vector<1x1x1xf32>
    %cst_86 = arith.constant 2.500000e-03 : f32
    %125 = arith.mulf %124, %cst_86 : f32
    %126 = arith.addf %95, %125 : f32
    %127 = arith.addf %96, %120 : f32
    %c0_87 = arith.constant 0 : index
    %c0_88 = arith.constant 0 : index
    %128 = vector.load %arg11[%c0_87, %c0_88] : memref<1x16xf32, #tpu.memory_space<vmem>>, vector<1x16xf32>
    %c0_89 = arith.constant 0 : index
    %c0_90 = arith.constant 0 : index
    %129 = vector.load %arg16[%c0_89, %c0_90] : memref<16x1xf32, #tpu.memory_space<vmem>>, vector<16x1xf32>
    %cst_91 = arith.constant dense<0.000000e+00> : vector<1x16xf32>
    %130 = tpu.matmul %128, %5, %cst_91 {dimension_numbers = #tpu.dot_dimension_numbers<[1], [0], [0], [1], [0, 0, 1, 1], [], []>} : vector<1x16xf32>, vector<16x16xf32>, vector<1x16xf32> -> vector<1x16xf32>
    %cst_92 = arith.constant dense<0.000000e+00> : vector<1x1xf32>
    %131 = tpu.matmul %130, %129, %cst_92 {dimension_numbers = #tpu.dot_dimension_numbers<[1], [0], [0], [1], [0, 0, 1, 1], [], []>} : vector<1x16xf32>, vector<16x1xf32>, vector<1x1xf32> -> vector<1x1xf32>
    %cst_93 = arith.constant dense<0.000000e+00> : vector<1x16xf32>
    %132 = tpu.matmul %128, %9, %cst_93 {dimension_numbers = #tpu.dot_dimension_numbers<[1], [0], [0], [1], [0, 0, 1, 1], [], []>} : vector<1x16xf32>, vector<16x16xf32>, vector<1x16xf32> -> vector<1x16xf32>
    %cst_94 = arith.constant dense<0.000000e+00> : vector<1x1xf32>
    %133 = tpu.matmul %132, %129, %cst_94 {dimension_numbers = #tpu.dot_dimension_numbers<[1], [0], [0], [1], [0, 0, 1, 1], [], []>} : vector<1x16xf32>, vector<16x1xf32>, vector<1x1xf32> -> vector<1x1xf32>
    %c0_95 = arith.constant 0 : index
    %c0_96 = arith.constant 0 : index
    %c0_97 = arith.constant 0 : index
    %c0_98 = arith.constant 0 : index
    %134 = vector.load %arg6[%c0_95, %c0_96, %c0_97, %c0_98] : memref<1x2x1x1xf32, #tpu.memory_space<vmem>>, vector<1x1x1x1xf32>
    %135 = vector.shape_cast %134 : vector<1x1x1x1xf32> to vector<1x1xf32>
    %136 = arith.subf %131, %135 : vector<1x1xf32>
    %137 = arith.mulf %136, %136 : vector<1x1xf32>
    %138 = math.absf %136 : vector<1x1xf32>
    %c0_99 = arith.constant 0 : index
    %c1_100 = arith.constant 1 : index
    %c0_101 = arith.constant 0 : index
    %c0_102 = arith.constant 0 : index
    %139 = vector.load %arg6[%c0_99, %c1_100, %c0_101, %c0_102] : memref<1x2x1x1xf32, #tpu.memory_space<vmem>>, vector<1x1x1x1xf32>
    %140 = vector.shape_cast %139 : vector<1x1x1x1xf32> to vector<1x1xf32>
    %141 = arith.subf %133, %140 : vector<1x1xf32>
    %142 = arith.mulf %141, %141 : vector<1x1xf32>
    %143 = arith.addf %137, %142 : vector<1x1xf32>
    %144 = math.absf %141 : vector<1x1xf32>
    %145 = arith.addf %138, %144 : vector<1x1xf32>
    %146 = math.sqrt %143 : vector<1x1xf32>
    %147 = vector.shape_cast %146 : vector<1x1xf32> to vector<1x1x1xf32>
    %cst_103 = arith.constant dense<0.000000e+00> : vector<1xf32>
    %148 = vector.multi_reduction <add>, %147, %cst_103 [1, 2] : vector<1x1x1xf32> to vector<1xf32>
    %149 = vector.shape_cast %148 : vector<1xf32> to vector<1x1x1xf32>
    %150 = vector.extract %149[0, 0, 0] : f32 from vector<1x1x1xf32>
    %cst_104 = arith.constant 0.00999999977 : f32
    %151 = arith.mulf %150, %cst_104 : f32
    %152 = vector.shape_cast %145 : vector<1x1xf32> to vector<1x1x1xf32>
    %cst_105 = arith.constant dense<0.000000e+00> : vector<1xf32>
    %153 = vector.multi_reduction <add>, %152, %cst_105 [1, 2] : vector<1x1x1xf32> to vector<1xf32>
    %154 = vector.shape_cast %153 : vector<1xf32> to vector<1x1x1xf32>
    %155 = vector.extract %154[0, 0, 0] : f32 from vector<1x1x1xf32>
    %cst_106 = arith.constant 5.000000e-03 : f32
    %156 = arith.mulf %155, %cst_106 : f32
    %157 = arith.addf %126, %156 : f32
    %158 = arith.addf %127, %151 : f32
    %159 = vector.broadcast %157 : f32 to vector<1x8x128xf32>
    %c0_107 = arith.constant 0 : index
    %c0_108 = arith.constant 0 : index
    %c0_109 = arith.constant 0 : index
    %160 = vector.load %arg17[%c0_107, %c0_108, %c0_109] : memref<1x8x128xf32, #tpu.memory_space<vmem>>, vector<1x8x128xf32>
    tpu.vector_store %arg17[%c0_107, %c0_108, %c0_109], %159 {strides = array<i32>} : memref<1x8x128xf32, #tpu.memory_space<vmem>>, vector<1x8x128xf32>,
    %161 = vector.broadcast %158 : f32 to vector<1x8x128xf32>
    %c0_110 = arith.constant 0 : index
    %c0_111 = arith.constant 0 : index
    %c0_112 = arith.constant 0 : index
    %162 = vector.load %arg18[%c0_110, %c0_111, %c0_112] : memref<1x8x128xf32, #tpu.memory_space<vmem>>, vector<1x8x128xf32>
    tpu.vector_store %arg18[%c0_110, %c0_111, %c0_112], %161 {strides = array<i32>} : memref<1x8x128xf32, #tpu.memory_space<vmem>>, vector<1x8x128xf32>,
    return
  }
  func.func @transform_0(%arg0: i32) -> (i32, i32, i32, i32) {
    %c0_i32 = arith.constant 0 : i32
    %c0_i32_0 = arith.constant 0 : i32
    %c0_i32_1 = arith.constant 0 : i32
    %c0_i32_2 = arith.constant 0 : i32
    return %arg0, %c0_i32, %c0_i32_0, %c0_i32_1 : i32, i32, i32, i32
  }
  func.func @transform_1(%arg0: i32) -> (i32, i32, i32, i32) {
    %c0_i32 = arith.constant 0 : i32
    %c0_i32_0 = arith.constant 0 : i32
    %c0_i32_1 = arith.constant 0 : i32
    %c0_i32_2 = arith.constant 0 : i32
    return %arg0, %c0_i32, %c0_i32_0, %c0_i32_1 : i32, i32, i32, i32
  }
  func.func @transform_2(%arg0: i32) -> (i32, i32, i32, i32) {
    %c0_i32 = arith.constant 0 : i32
    %c0_i32_0 = arith.constant 0 : i32
    %c0_i32_1 = arith.constant 0 : i32
    %c0_i32_2 = arith.constant 0 : i32
    return %arg0, %c0_i32, %c0_i32_0, %c0_i32_1 : i32, i32, i32, i32
  }
  func.func @transform_3(%arg0: i32) -> (i32, i32, i32, i32) {
    %c0_i32 = arith.constant 0 : i32
    %c0_i32_0 = arith.constant 0 : i32
    %c0_i32_1 = arith.constant 0 : i32
    %c0_i32_2 = arith.constant 0 : i32
    return %arg0, %c0_i32, %c0_i32_0, %c0_i32_1 : i32, i32, i32, i32
  }
  func.func @transform_4(%arg0: i32) -> (i32, i32, i32, i32) {
    %c0_i32 = arith.constant 0 : i32
    %c0_i32_0 = arith.constant 0 : i32
    %c0_i32_1 = arith.constant 0 : i32
    %c0_i32_2 = arith.constant 0 : i32
    return %arg0, %c0_i32, %c0_i32_0, %c0_i32_1 : i32, i32, i32, i32
  }
  func.func @transform_5(%arg0: i32) -> (i32, i32, i32, i32) {
    %c0_i32 = arith.constant 0 : i32
    %c0_i32_0 = arith.constant 0 : i32
    %c0_i32_1 = arith.constant 0 : i32
    %c0_i32_2 = arith.constant 0 : i32
    return %arg0, %c0_i32, %c0_i32_0, %c0_i32_1 : i32, i32, i32, i32
  }
  func.func @transform_6(%arg0: i32) -> (i32, i32) {
    %c0_i32 = arith.constant 0 : i32
    %c0_i32_0 = arith.constant 0 : i32
    %c0_i32_1 = arith.constant 0 : i32
    return %c0_i32, %c0_i32_0 : i32, i32
  }
  func.func @transform_7(%arg0: i32) -> (i32, i32) {
    %c0_i32 = arith.constant 0 : i32
    %c0_i32_0 = arith.constant 0 : i32
    %c0_i32_1 = arith.constant 0 : i32
    return %c0_i32, %c0_i32_0 : i32, i32
  }
  func.func @transform_8(%arg0: i32) -> (i32, i32) {
    %c0_i32 = arith.constant 0 : i32
    %c0_i32_0 = arith.constant 0 : i32
    %c0_i32_1 = arith.constant 0 : i32
    return %c0_i32, %c0_i32_0 : i32, i32
  }
  func.func @transform_9(%arg0: i32) -> (i32, i32) {
    %c0_i32 = arith.constant 0 : i32
    %c0_i32_0 = arith.constant 0 : i32
    %c0_i32_1 = arith.constant 0 : i32
    return %c0_i32, %c0_i32_0 : i32, i32
  }
  func.func @transform_10(%arg0: i32) -> (i32, i32) {
    %c0_i32 = arith.constant 0 : i32
    %c0_i32_0 = arith.constant 0 : i32
    %c0_i32_1 = arith.constant 0 : i32
    return %c0_i32, %c0_i32_0 : i32, i32
  }
  func.func @transform_11(%arg0: i32) -> (i32, i32) {
    %c0_i32 = arith.constant 0 : i32
    %c0_i32_0 = arith.constant 0 : i32
    %c0_i32_1 = arith.constant 0 : i32
    return %c0_i32, %c0_i32_0 : i32, i32
  }
  func.func @transform_12(%arg0: i32) -> (i32, i32) {
    %c0_i32 = arith.constant 0 : i32
    %c0_i32_0 = arith.constant 0 : i32
    %c0_i32_1 = arith.constant 0 : i32
    return %c0_i32, %c0_i32_0 : i32, i32
  }
  func.func @transform_13(%arg0: i32) -> (i32, i32) {
    %c0_i32 = arith.constant 0 : i32
    %c0_i32_0 = arith.constant 0 : i32
    %c0_i32_1 = arith.constant 0 : i32
    return %c0_i32, %c0_i32_0 : i32, i32
  }
  func.func @transform_14(%arg0: i32) -> (i32, i32) {
    %c0_i32 = arith.constant 0 : i32
    %c0_i32_0 = arith.constant 0 : i32
    %c0_i32_1 = arith.constant 0 : i32
    return %c0_i32, %c0_i32_0 : i32, i32
  }
  func.func @transform_15(%arg0: i32) -> (i32, i32) {
    %c0_i32 = arith.constant 0 : i32
    %c0_i32_0 = arith.constant 0 : i32
    %c0_i32_1 = arith.constant 0 : i32
    return %c0_i32, %c0_i32_0 : i32, i32
  }
  func.func @transform_16(%arg0: i32) -> (i32, i32, i32) {
    %c0_i32 = arith.constant 0 : i32
    %c0_i32_0 = arith.constant 0 : i32
    %c0_i32_1 = arith.constant 0 : i32
    return %arg0, %c0_i32, %c0_i32_0 : i32, i32, i32
  }
  func.func @transform_17(%arg0: i32) -> (i32, i32, i32) {
    %c0_i32 = arith.constant 0 : i32
    %c0_i32_0 = arith.constant 0 : i32
    %c0_i32_1 = arith.constant 0 : i32
    return %arg0, %c0_i32, %c0_i32_0 : i32, i32, i32
  }
}

</mosaic_0001>

<llo_original>
// kernel: tpu_custom_call.1
$region0: #{tpu_custom_call.1}
  #allocation0 [shape = 'u32[]', space=smem, size = 0x4, offset = 0x4, fixed_abs, tag = 'smem constant byte address 0x4 - core index']
  #allocation1 [shape = 'u32[144,128]{1,0:T(1,128)}', space=vmem, size = 0x12000, scoped, tag = 'internal scratch']
  %s0 = inlined_call_operand.hbm [shape: f32[2,2,64,64], index: 0, kind: input, shape index: {}]
  %s1 = inlined_call_operand.vmem [shape: f32[2,2,16,16], index: 1, kind: input, shape index: {}]
  %s2 = inlined_call_operand.vmem [shape: f32[2,2,8,8], index: 2, kind: input, shape index: {}]
  %s3 = inlined_call_operand.vmem [shape: f32[2,2,4,4], index: 3, kind: input, shape index: {}]
  %s4 = inlined_call_operand.vmem [shape: f32[2,2,2,2], index: 4, kind: input, shape index: {}]
  %s5 = inlined_call_operand.vmem [shape: f32[2,2,1,1], index: 5, kind: input, shape index: {}]
  %s6 = inlined_call_operand.vmem [shape: f32[16,64], index: 6, kind: input, shape index: {}]
  %s7 = inlined_call_operand.vmem [shape: f32[8,16], index: 7, kind: input, shape index: {}]
  %s8 = inlined_call_operand.vmem [shape: f32[4,16], index: 8, kind: input, shape index: {}]
  %s9 = inlined_call_operand.vmem [shape: f32[2,16], index: 9, kind: input, shape index: {}]
  %s10 = inlined_call_operand.vmem [shape: f32[1,16], index: 10, kind: input, shape index: {}]
  %s11 = inlined_call_operand.vmem [shape: f32[64,16], index: 11, kind: input, shape index: {}]
  %s12 = inlined_call_operand.vmem [shape: f32[16,8], index: 12, kind: input, shape index: {}]
  %s13 = inlined_call_operand.vmem [shape: f32[16,4], index: 13, kind: input, shape index: {}]
  %s14 = inlined_call_operand.vmem [shape: f32[16,2], index: 14, kind: input, shape index: {}]
  %s15 = inlined_call_operand.vmem [shape: f32[16,1], index: 15, kind: input, shape index: {}]
  %s16 = inlined_call_operand.hbm [shape: f32[2,8,128], index: 16, kind: output, shape index: {0}]
  %s17 = inlined_call_operand.hbm [shape: f32[2,8,128], index: 17, kind: output, shape index: {1}]
  %18 = xla_tuple %s16, %s17
  %s19 = sld [smem:[#allocation0]]
  $region109: #{tpu_custom_call.1} parent=0
    _
  %s21 = ssub.s32 1, %s19
  %s22 = scalar_select 0, %s21, %s19
  $region1: #{tpu_custom_call.1} parent=0
    #allocation2 [shape = 'u8[131072]{0}', space=vmem, size = 0x20000, scoped, tag = 'input window, operand 0']
    #allocation3 [shape = 's32[2]{0}', space=sflag, size = 0x8, scoped, tag = 'scoped memory for tpu_custom_call.1']
    #allocation4 [shape = 's32[2]{0}', space=sflag, size = 0x8, scoped, tag = 'scoped memory for tpu_custom_call.1']
    #allocation5 [shape = 'u8[8192]{0}', space=vmem, size = 0x2000, scoped, tag = 'output window, operand 0']
    #allocation6 [shape = 'u8[8192]{0}', space=vmem, size = 0x2000, scoped, tag = 'output window, operand 1']
    #allocation7 [shape = 's32[2]{0}', space=sflag, size = 0x8, scoped, tag = 'scoped memory for tpu_custom_call.1']
    %23 = vsyncpa [#allocation3], 0
    %s24 = scalar_lea.sflag [#allocation3], 1
    %25 = vsyncpa %s24, 0
    %26 = vsyncpa [#allocation4], 0
    %s27 = scalar_lea.sflag [#allocation4], 1
    %28 = vsyncpa %s27, 0
    %29 = vsyncpa [#allocation7], 0
    %s30 = scalar_lea.sflag [#allocation7], 1
    %31 = vsyncpa %s30, 0
    loop: start=0, step=1, limit=4
    $region2: #{tpu_custom_call.1} parent=1 // loop_pre_header
      _
    $region3: #{tpu_custom_call.1} parent=1 // loop_header
      %s33 = sphi 0, %s37
      %p34 = scmp.ge.s32.totalorder %s33, 4
      %s43 = sphi 0, %s45
      %s46 = sphi 0, %s43
      %s47 = sphi 0, %s46
      %s63 = sphi 0, %s47
      %s69 = sphi 0, %s71
      %s72 = sphi 0, %s69
      %s73 = sphi 0, %s72
      %s89 = sphi 0, %s73
      %s95 = sphi 0, %s97
      %s98 = sphi 0, %s95
      %s99 = sphi 0, %s98
      %s115 = sphi 0, %s99
      %s121 = sphi 0, %s123
      %s124 = sphi 0, %s121
      %s125 = sphi 0, %s124
      %s141 = sphi 0, %s125
      %s147 = sphi 0, %s149
      %s150 = sphi 0, %s147
      %s151 = sphi 0, %s150
      %s167 = sphi 0, %s151
      %s173 = sphi 0, %s175
      %s176 = sphi 0, %s173
      %s177 = sphi 0, %s176
      %s193 = sphi 0, %s177
      %s197 = sphi 0, %s197
      %s199 = sphi 0, %s197
      %s200 = sphi 0, %s199
      %s214 = sphi 0, %s200
      %s218 = sphi 0, %s218
      %s220 = sphi 0, %s218
      %s221 = sphi 0, %s220
      %s235 = sphi 0, %s221
      %s239 = sphi 0, %s239
      %s241 = sphi 0, %s239
      %s242 = sphi 0, %s241
      %s256 = sphi 0, %s242
      %s260 = sphi 0, %s260
      %s262 = sphi 0, %s260
      %s263 = sphi 0, %s262
      %s277 = sphi 0, %s263
      %s281 = sphi 0, %s281
      %s283 = sphi 0, %s281
      %s284 = sphi 0, %s283
      %s298 = sphi 0, %s284
      %s302 = sphi 0, %s302
      %s304 = sphi 0, %s302
      %s305 = sphi 0, %s304
      %s319 = sphi 0, %s305
      %s323 = sphi 0, %s323
      %s325 = sphi 0, %s323
      %s326 = sphi 0, %s325
      %s340 = sphi 0, %s326
      %s344 = sphi 0, %s344
      %s346 = sphi 0, %s344
      %s347 = sphi 0, %s346
      %s361 = sphi 0, %s347
      %s365 = sphi 0, %s365
      %s367 = sphi 0, %s365
      %s368 = sphi 0, %s367
      %s382 = sphi 0, %s368
      %s386 = sphi 0, %s386
      %s388 = sphi 0, %s386
      %s389 = sphi 0, %s388
      %s403 = sphi 0, %s389
      %s409 = sphi 0, %s411
      %s412 = sphi 0, %s409
      %s413 = sphi 0, %s412
      %s429 = sphi 0, %s413
      %s435 = sphi 0, %s437
      %s438 = sphi 0, %s435
      %s439 = sphi 0, %s438
      %s455 = sphi 0, %s439
    $region4: #{tpu_custom_call.1} parent=1 // loop_header_branch
      %36 = sbr.rel (%p34) target = $region8
    $region5: #{tpu_custom_call.1} parent=1 // loop_body
      %s38 = ssub.s32 %s33, 1
      %s39 = ssub.s32 %s33, 2
      %s40 = sadd.s32 %s33, 1
      %s41 = ssub.s32 %s33, %s40
      %p42 = scmp.eq.s32.totalorder %s41, 0
      %s44 = sadd.s32 %s43, 1
      %s45 = scalar_select %p42, %s43, %s44
      %p48 = pneg %p42
      %p49 = scmp.eq.s32.totalorder %s33, 1
      %p50 = por %p48, %p49
      %p51 = scmp.ne.s32.totalorder %s43, %s46
      %p52 = scmp.eq.s32.totalorder %s33, 0
      %p53 = por %p51, %p52
      %p54 = scmp.ne.s32.totalorder %s43, %s46
      %p55 = scmp.eq.s32.totalorder %s38, 1
      %p56 = por %p54, %p55
      %p57 = scmp.ne.s32.totalorder %s46, %s47
      %p58 = scmp.eq.s32.totalorder %s38, 0
      %p59 = por %p57, %p58
      %p60 = scmp.ne.s32.totalorder %s46, %s47
      %p61 = scmp.eq.s32.totalorder %s39, 1
      %p62 = por %p60, %p61
      %p64 = scmp.ne.s32.totalorder %s47, %s63
      %p65 = scmp.eq.s32.totalorder %s39, 0
      %p66 = por %p64, %p65
      %s67 = ssub.s32 %s33, %s40
      %p68 = scmp.eq.s32.totalorder %s67, 0
      %s70 = sadd.s32 %s69, 1
      %s71 = scalar_select %p68, %s69, %s70
      %p74 = pneg %p68
      %p75 = scmp.eq.s32.totalorder %s33, 1
      %p76 = por %p74, %p75
      %p77 = scmp.ne.s32.totalorder %s69, %s72
      %p78 = scmp.eq.s32.totalorder %s33, 0
      %p79 = por %p77, %p78
      %p80 = scmp.ne.s32.totalorder %s69, %s72
      %p81 = scmp.eq.s32.totalorder %s38, 1
      %p82 = por %p80, %p81
      %p83 = scmp.ne.s32.totalorder %s72, %s73
      %p84 = scmp.eq.s32.totalorder %s38, 0
      %p85 = por %p83, %p84
      %p86 = scmp.ne.s32.totalorder %s72, %s73
      %p87 = scmp.eq.s32.totalorder %s39, 1
      %p88 = por %p86, %p87
      %p90 = scmp.ne.s32.totalorder %s73, %s89
      %p91 = scmp.eq.s32.totalorder %s39, 0
      %p92 = por %p90, %p91
      %s93 = ssub.s32 %s33, %s40
      %p94 = scmp.eq.s32.totalorder %s93, 0
      %s96 = sadd.s32 %s95, 1
      %s97 = scalar_select %p94, %s95, %s96
      %p100 = pneg %p94
      %p101 = scmp.eq.s32.totalorder %s33, 1
      %p102 = por %p100, %p101
      %p103 = scmp.ne.s32.totalorder %s95, %s98
      %p104 = scmp.eq.s32.totalorder %s33, 0
      %p105 = por %p103, %p104
      %p106 = scmp.ne.s32.totalorder %s95, %s98
      %p107 = scmp.eq.s32.totalorder %s38, 1
      %p108 = por %p106, %p107
      %p109 = scmp.ne.s32.totalorder %s98, %s99
      %p110 = scmp.eq.s32.totalorder %s38, 0
      %p111 = por %p109, %p110
      %p112 = scmp.ne.s32.totalorder %s98, %s99
      %p113 = scmp.eq.s32.totalorder %s39, 1
      %p114 = por %p112, %p113
      %p116 = scmp.ne.s32.totalorder %s99, %s115
      %p117 = scmp.eq.s32.totalorder %s39, 0
      %p118 = por %p116, %p117
      %s119 = ssub.s32 %s33, %s40
      %p120 = scmp.eq.s32.totalorder %s119, 0
      %s122 = sadd.s32 %s121, 1
      %s123 = scalar_select %p120, %s121, %s122
      %p126 = pneg %p120
      %p127 = scmp.eq.s32.totalorder %s33, 1
      %p128 = por %p126, %p127
      %p129 = scmp.ne.s32.totalorder %s121, %s124
      %p130 = scmp.eq.s32.totalorder %s33, 0
      %p131 = por %p129, %p130
      %p132 = scmp.ne.s32.totalorder %s121, %s124
      %p133 = scmp.eq.s32.totalorder %s38, 1
      %p134 = por %p132, %p133
      %p135 = scmp.ne.s32.totalorder %s124, %s125
      %p136 = scmp.eq.s32.totalorder %s38, 0
      %p137 = por %p135, %p136
      %p138 = scmp.ne.s32.totalorder %s124, %s125
      %p139 = scmp.eq.s32.totalorder %s39, 1
      %p140 = por %p138, %p139
      %p142 = scmp.ne.s32.totalorder %s125, %s141
      %p143 = scmp.eq.s32.totalorder %s39, 0
      %p144 = por %p142, %p143
      %s145 = ssub.s32 %s33, %s40
      %p146 = scmp.eq.s32.totalorder %s145, 0
      %s148 = sadd.s32 %s147, 1
      %s149 = scalar_select %p146, %s147, %s148
      %p152 = pneg %p146
      %p153 = scmp.eq.s32.totalorder %s33, 1
      %p154 = por %p152, %p153
      %p155 = scmp.ne.s32.totalorder %s147, %s150
      %p156 = scmp.eq.s32.totalorder %s33, 0
      %p157 = por %p155, %p156
      %p158 = scmp.ne.s32.totalorder %s147, %s150
      %p159 = scmp.eq.s32.totalorder %s38, 1
      %p160 = por %p158, %p159
      %p161 = scmp.ne.s32.totalorder %s150, %s151
      %p162 = scmp.eq.s32.totalorder %s38, 0
      %p163 = por %p161, %p162
      %p164 = scmp.ne.s32.totalorder %s150, %s151
      %p165 = scmp.eq.s32.totalorder %s39, 1
      %p166 = por %p164, %p165
      %p168 = scmp.ne.s32.totalorder %s151, %s167
      %p169 = scmp.eq.s32.totalorder %s39, 0
      %p170 = por %p168, %p169
      %s171 = ssub.s32 %s33, %s40
      %p172 = scmp.eq.s32.totalorder %s171, 0
      %s174 = sadd.s32 %s173, 1
      %s175 = scalar_select %p172, %s173, %s174
      %p178 = pneg %p172
      %p179 = scmp.eq.s32.totalorder %s33, 1
      %p180 = por %p178, %p179
      %p181 = scmp.ne.s32.totalorder %s173, %s176
      %p182 = scmp.eq.s32.totalorder %s33, 0
      %p183 = por %p181, %p182
      %p184 = scmp.ne.s32.totalorder %s173, %s176
      %p185 = scmp.eq.s32.totalorder %s38, 1
      %p186 = por %p184, %p185
      %p187 = scmp.ne.s32.totalorder %s176, %s177
      %p188 = scmp.eq.s32.totalorder %s38, 0
      %p189 = por %p187, %p188
      %p190 = scmp.ne.s32.totalorder %s176, %s177
      %p191 = scmp.eq.s32.totalorder %s39, 1
      %p192 = por %p190, %p191
      %p194 = scmp.ne.s32.totalorder %s177, %s193
      %p195 = scmp.eq.s32.totalorder %s39, 0
      %p196 = por %p194, %p195
      %s198 = sadd.s32 %s197, 1
      %p201 = scmp.eq.s32.totalorder %s33, 1
      %p202 = scmp.ne.s32.totalorder %s197, %s199
      %p203 = scmp.eq.s32.totalorder %s33, 0
      %p204 = por %p202, %p203
      %p205 = scmp.ne.s32.totalorder %s197, %s199
      %p206 = scmp.eq.s32.totalorder %s38, 1
      %p207 = por %p205, %p206
      %p208 = scmp.ne.s32.totalorder %s199, %s200
      %p209 = scmp.eq.s32.totalorder %s38, 0
      %p210 = por %p208, %p209
      %p211 = scmp.ne.s32.totalorder %s199, %s200
      %p212 = scmp.eq.s32.totalorder %s39, 1
      %p213 = por %p211, %p212
      %p215 = scmp.ne.s32.totalorder %s200, %s214
      %p216 = scmp.eq.s32.totalorder %s39, 0
      %p217 = por %p215, %p216
      %s219 = sadd.s32 %s218, 1
      %p222 = scmp.eq.s32.totalorder %s33, 1
      %p223 = scmp.ne.s32.totalorder %s218, %s220
      %p224 = scmp.eq.s32.totalorder %s33, 0
      %p225 = por %p223, %p224
      %p226 = scmp.ne.s32.totalorder %s218, %s220
      %p227 = scmp.eq.s32.totalorder %s38, 1
      %p228 = por %p226, %p227
      %p229 = scmp.ne.s32.totalorder %s220, %s221
      %p230 = scmp.eq.s32.totalorder %s38, 0
      %p231 = por %p229, %p230
      %p232 = scmp.ne.s32.totalorder %s220, %s221
      %p233 = scmp.eq.s32.totalorder %s39, 1
      %p234 = por %p232, %p233
      %p236 = scmp.ne.s32.totalorder %s221, %s235
      %p237 = scmp.eq.s32.totalorder %s39, 0
      %p238 = por %p236, %p237
      %s240 = sadd.s32 %s239, 1
      %p243 = scmp.eq.s32.totalorder %s33, 1
      %p244 = scmp.ne.s32.totalorder %s239, %s241
      %p245 = scmp.eq.s32.totalorder %s33, 0
      %p246 = por %p244, %p245
      %p247 = scmp.ne.s32.totalorder %s239, %s241
      %p248 = scmp.eq.s32.totalorder %s38, 1
      %p249 = por %p247, %p248
      %p250 = scmp.ne.s32.totalorder %s241, %s242
      %p251 = scmp.eq.s32.totalorder %s38, 0
      %p252 = por %p250, %p251
      %p253 = scmp.ne.s32.totalorder %s241, %s242
      %p254 = scmp.eq.s32.totalorder %s39, 1
      %p255 = por %p253, %p254
      %p257 = scmp.ne.s32.totalorder %s242, %s256
      %p258 = scmp.eq.s32.totalorder %s39, 0
      %p259 = por %p257, %p258
      %s261 = sadd.s32 %s260, 1
      %p264 = scmp.eq.s32.totalorder %s33, 1
      %p265 = scmp.ne.s32.totalorder %s260, %s262
      %p266 = scmp.eq.s32.totalorder %s33, 0
      %p267 = por %p265, %p266
      %p268 = scmp.ne.s32.totalorder %s260, %s262
      %p269 = scmp.eq.s32.totalorder %s38, 1
      %p270 = por %p268, %p269
      %p271 = scmp.ne.s32.totalorder %s262, %s263
      %p272 = scmp.eq.s32.totalorder %s38, 0
      %p273 = por %p271, %p272
      %p274 = scmp.ne.s32.totalorder %s262, %s263
      %p275 = scmp.eq.s32.totalorder %s39, 1
      %p276 = por %p274, %p275
      %p278 = scmp.ne.s32.totalorder %s263, %s277
      %p279 = scmp.eq.s32.totalorder %s39, 0
      %p280 = por %p278, %p279
      %s282 = sadd.s32 %s281, 1
      %p285 = scmp.eq.s32.totalorder %s33, 1
      %p286 = scmp.ne.s32.totalorder %s281, %s283
      %p287 = scmp.eq.s32.totalorder %s33, 0
      %p288 = por %p286, %p287
      %p289 = scmp.ne.s32.totalorder %s281, %s283
      %p290 = scmp.eq.s32.totalorder %s38, 1
      %p291 = por %p289, %p290
      %p292 = scmp.ne.s32.totalorder %s283, %s284
      %p293 = scmp.eq.s32.totalorder %s38, 0
      %p294 = por %p292, %p293
      %p295 = scmp.ne.s32.totalorder %s283, %s284
      %p296 = scmp.eq.s32.totalorder %s39, 1
      %p297 = por %p295, %p296
      %p299 = scmp.ne.s32.totalorder %s284, %s298
      %p300 = scmp.eq.s32.totalorder %s39, 0
      %p301 = por %p299, %p300
      %s303 = sadd.s32 %s302, 1
      %p306 = scmp.eq.s32.totalorder %s33, 1
      %p307 = scmp.ne.s32.totalorder %s302, %s304
      %p308 = scmp.eq.s32.totalorder %s33, 0
      %p309 = por %p307, %p308
      %p310 = scmp.ne.s32.totalorder %s302, %s304
      %p311 = scmp.eq.s32.totalorder %s38, 1
      %p312 = por %p310, %p311
      %p313 = scmp.ne.s32.totalorder %s304, %s305
      %p314 = scmp.eq.s32.totalorder %s38, 0
      %p315 = por %p313, %p314
      %p316 = scmp.ne.s32.totalorder %s304, %s305
      %p317 = scmp.eq.s32.totalorder %s39, 1
      %p318 = por %p316, %p317
      %p320 = scmp.ne.s32.totalorder %s305, %s319
      %p321 = scmp.eq.s32.totalorder %s39, 0
      %p322 = por %p320, %p321
      %s324 = sadd.s32 %s323, 1
      %p327 = scmp.eq.s32.totalorder %s33, 1
      %p328 = scmp.ne.s32.totalorder %s323, %s325
      %p329 = scmp.eq.s32.totalorder %s33, 0
      %p330 = por %p328, %p329
      %p331 = scmp.ne.s32.totalorder %s323, %s325
      %p332 = scmp.eq.s32.totalorder %s38, 1
      %p333 = por %p331, %p332
      %p334 = scmp.ne.s32.totalorder %s325, %s326
      %p335 = scmp.eq.s32.totalorder %s38, 0
      %p336 = por %p334, %p335
      %p337 = scmp.ne.s32.totalorder %s325, %s326
      %p338 = scmp.eq.s32.totalorder %s39, 1
      %p339 = por %p337, %p338
      %p341 = scmp.ne.s32.totalorder %s326, %s340
      %p342 = scmp.eq.s32.totalorder %s39, 0
      %p343 = por %p341, %p342
      %s345 = sadd.s32 %s344, 1
      %p348 = scmp.eq.s32.totalorder %s33, 1
      %p349 = scmp.ne.s32.totalorder %s344, %s346
      %p350 = scmp.eq.s32.totalorder %s33, 0
      %p351 = por %p349, %p350
      %p352 = scmp.ne.s32.totalorder %s344, %s346
      %p353 = scmp.eq.s32.totalorder %s38, 1
      %p354 = por %p352, %p353
      %p355 = scmp.ne.s32.totalorder %s346, %s347
      %p356 = scmp.eq.s32.totalorder %s38, 0
      %p357 = por %p355, %p356
      %p358 = scmp.ne.s32.totalorder %s346, %s347
      %p359 = scmp.eq.s32.totalorder %s39, 1
      %p360 = por %p358, %p359
      %p362 = scmp.ne.s32.totalorder %s347, %s361
      %p363 = scmp.eq.s32.totalorder %s39, 0
      %p364 = por %p362, %p363
      %s366 = sadd.s32 %s365, 1
      %p369 = scmp.eq.s32.totalorder %s33, 1
      %p370 = scmp.ne.s32.totalorder %s365, %s367
      %p371 = scmp.eq.s32.totalorder %s33, 0
      %p372 = por %p370, %p371
      %p373 = scmp.ne.s32.totalorder %s365, %s367
      %p374 = scmp.eq.s32.totalorder %s38, 1
      %p375 = por %p373, %p374
      %p376 = scmp.ne.s32.totalorder %s367, %s368
      %p377 = scmp.eq.s32.totalorder %s38, 0
      %p378 = por %p376, %p377
      %p379 = scmp.ne.s32.totalorder %s367, %s368
      %p380 = scmp.eq.s32.totalorder %s39, 1
      %p381 = por %p379, %p380
      %p383 = scmp.ne.s32.totalorder %s368, %s382
      %p384 = scmp.eq.s32.totalorder %s39, 0
      %p385 = por %p383, %p384
      %s387 = sadd.s32 %s386, 1
      %p390 = scmp.eq.s32.totalorder %s33, 1
      %p391 = scmp.ne.s32.totalorder %s386, %s388
      %p392 = scmp.eq.s32.totalorder %s33, 0
      %p393 = por %p391, %p392
      %p394 = scmp.ne.s32.totalorder %s386, %s388
      %p395 = scmp.eq.s32.totalorder %s38, 1
      %p396 = por %p394, %p395
      %p397 = scmp.ne.s32.totalorder %s388, %s389
      %p398 = scmp.eq.s32.totalorder %s38, 0
      %p399 = por %p397, %p398
      %p400 = scmp.ne.s32.totalorder %s388, %s389
      %p401 = scmp.eq.s32.totalorder %s39, 1
      %p402 = por %p400, %p401
      %p404 = scmp.ne.s32.totalorder %s389, %s403
      %p405 = scmp.eq.s32.totalorder %s39, 0
      %p406 = por %p404, %p405
      %s407 = ssub.s32 %s33, %s40
      %p408 = scmp.eq.s32.totalorder %s407, 0
      %s410 = sadd.s32 %s409, 1
      %s411 = scalar_select %p408, %s409, %s410
      %p414 = pneg %p408
      %p415 = scmp.eq.s32.totalorder %s33, 1
      %p416 = por %p414, %p415
      %p417 = scmp.ne.s32.totalorder %s409, %s412
      %p418 = scmp.eq.s32.totalorder %s33, 0
      %p419 = por %p417, %p418
      %p420 = scmp.ne.s32.totalorder %s409, %s412
      %p421 = scmp.eq.s32.totalorder %s38, 1
      %p422 = por %p420, %p421
      %p423 = scmp.ne.s32.totalorder %s412, %s413
      %p424 = scmp.eq.s32.totalorder %s38, 0
      %p425 = por %p423, %p424
      %p426 = scmp.ne.s32.totalorder %s412, %s413
      %p427 = scmp.eq.s32.totalorder %s39, 1
      %p428 = por %p426, %p427
      %p430 = scmp.ne.s32.totalorder %s413, %s429
      %p431 = scmp.eq.s32.totalorder %s39, 0
      %p432 = por %p430, %p431
      %s433 = ssub.s32 %s33, %s40
      %p434 = scmp.eq.s32.totalorder %s433, 0
      %s436 = sadd.s32 %s435, 1
      %s437 = scalar_select %p434, %s435, %s436
      %p440 = pneg %p434
      %p441 = scmp.eq.s32.totalorder %s33, 1
      %p442 = por %p440, %p441
      %p443 = scmp.ne.s32.totalorder %s435, %s438
      %p444 = scmp.eq.s32.totalorder %s33, 0
      %p445 = por %p443, %p444
      %p446 = scmp.ne.s32.totalorder %s435, %s438
      %p447 = scmp.eq.s32.totalorder %s38, 1
      %p448 = por %p446, %p447
      %p449 = scmp.ne.s32.totalorder %s438, %s439
      %p450 = scmp.eq.s32.totalorder %s38, 0
      %p451 = por %p449, %p450
      %p452 = scmp.ne.s32.totalorder %s438, %s439
      %p453 = scmp.eq.s32.totalorder %s39, 1
      %p454 = por %p452, %p453
      %p456 = scmp.ne.s32.totalorder %s439, %s455
      %p457 = scmp.eq.s32.totalorder %s39, 0
      %p458 = por %p456, %p457
      %p459 = scmp.le.s32.totalorder 1, %s33
      %p460 = scmp.lt.s32.totalorder %s33, 3
      %p461 = pnand %p459, %p460
      %p462 = pneg %p461
      // Predicated region
      $region9: #{tpu_custom_call.1} parent=5 // pred_check
        _
      $region10: #{tpu_custom_call.1} parent=5 // pred_check_branch
        %464 = sbr.rel (%p461) target = $region12
      $region11: #{tpu_custom_call.1} parent=5 // pred_region
        %s465 = ssub.s32 %s33, 1
        // Predicated region
        $region13: #{tpu_custom_call.1} parent=11 // pred_check
          %p466 = pneg %p210
        $region14: #{tpu_custom_call.1} parent=11 // pred_check_branch
          %468 = sbr.rel (%p466) target = $region16
        $region15: #{tpu_custom_call.1} parent=11 // pred_region
          _
        $region16: #{tpu_custom_call.1} parent=11 // pred_fallthru
          _
        // Predicated region
        $region17: #{tpu_custom_call.1} parent=11 // pred_check
          %p469 = pneg %p231
        $region18: #{tpu_custom_call.1} parent=11 // pred_check_branch
          %471 = sbr.rel (%p469) target = $region20
        $region19: #{tpu_custom_call.1} parent=11 // pred_region
          _
        $region20: #{tpu_custom_call.1} parent=11 // pred_fallthru
          _
        // Predicated region
        $region21: #{tpu_custom_call.1} parent=11 // pred_check
          %p472 = pneg %p252
        $region22: #{tpu_custom_call.1} parent=11 // pred_check_branch
          %474 = sbr.rel (%p472) target = $region24
        $region23: #{tpu_custom_call.1} parent=11 // pred_region
          _
        $region24: #{tpu_custom_call.1} parent=11 // pred_fallthru
          _
        // Predicated region
        $region25: #{tpu_custom_call.1} parent=11 // pred_check
          %p475 = pneg %p273
        $region26: #{tpu_custom_call.1} parent=11 // pred_check_branch
          %477 = sbr.rel (%p475) target = $region28
        $region27: #{tpu_custom_call.1} parent=11 // pred_region
          _
        $region28: #{tpu_custom_call.1} parent=11 // pred_fallthru
          _
        // Predicated region
        $region29: #{tpu_custom_call.1} parent=11 // pred_check
          %p478 = pneg %p294
        $region30: #{tpu_custom_call.1} parent=11 // pred_check_branch
          %480 = sbr.rel (%p478) target = $region32
        $region31: #{tpu_custom_call.1} parent=11 // pred_region
          _
        $region32: #{tpu_custom_call.1} parent=11 // pred_fallthru
          _
        // Predicated region
        $region33: #{tpu_custom_call.1} parent=11 // pred_check
          %p481 = pneg %p315
        $region34: #{tpu_custom_call.1} parent=11 // pred_check_branch
          %483 = sbr.rel (%p481) target = $region36
        $region35: #{tpu_custom_call.1} parent=11 // pred_region
          _
        $region36: #{tpu_custom_call.1} parent=11 // pred_fallthru
          _
        // Predicated region
        $region37: #{tpu_custom_call.1} parent=11 // pred_check
          %p484 = pneg %p336
        $region38: #{tpu_custom_call.1} parent=11 // pred_check_branch
          %486 = sbr.rel (%p484) target = $region40
        $region39: #{tpu_custom_call.1} parent=11 // pred_region
          _
        $region40: #{tpu_custom_call.1} parent=11 // pred_fallthru
          _
        // Predicated region
        $region41: #{tpu_custom_call.1} parent=11 // pred_check
          %p487 = pneg %p357
        $region42: #{tpu_custom_call.1} parent=11 // pred_check_branch
          %489 = sbr.rel (%p487) target = $region44
        $region43: #{tpu_custom_call.1} parent=11 // pred_region
          _
        $region44: #{tpu_custom_call.1} parent=11 // pred_fallthru
          _
        // Predicated region
        $region45: #{tpu_custom_call.1} parent=11 // pred_check
          %p490 = pneg %p378
        $region46: #{tpu_custom_call.1} parent=11 // pred_check_branch
          %492 = sbr.rel (%p490) target = $region48
        $region47: #{tpu_custom_call.1} parent=11 // pred_region
          _
        $region48: #{tpu_custom_call.1} parent=11 // pred_fallthru
          _
        // Predicated region
        $region49: #{tpu_custom_call.1} parent=11 // pred_check
          %p493 = pneg %p399
        $region50: #{tpu_custom_call.1} parent=11 // pred_check_branch
          %495 = sbr.rel (%p493) target = $region52
        $region51: #{tpu_custom_call.1} parent=11 // pred_region
          _
        $region52: #{tpu_custom_call.1} parent=11 // pred_fallthru
          _
      $region12: #{tpu_custom_call.1} parent=5 // pred_fallthru
        _
      %p496 = scmp.lt.s32.totalorder %s33, 2
      // Predicated region
      $region53: #{tpu_custom_call.1} parent=5 // pred_check
        %p497 = pneg %p496
      $region54: #{tpu_custom_call.1} parent=5 // pred_check_branch
        %499 = sbr.rel (%p497) target = $region56
      $region55: #{tpu_custom_call.1} parent=5 // pred_region
        // Predicated region
        $region57: #{tpu_custom_call.1} parent=55 // pred_check
          %p500 = pneg %p53
        $region58: #{tpu_custom_call.1} parent=55 // pred_check_branch
          %502 = sbr.rel (%p500) target = $region60
        $region59: #{tpu_custom_call.1} parent=55 // pred_region
          %s503 = sand.u32 %s43, 1
          %s504 = scalar_lea.sflag [#allocation3], %s503
          %s505 = sand.u32 %s43, 1
          %s506 = smul.addr %s505, 128
          %s507 = scalar_lea.vmem [#allocation2], %s506
          %s509 = ssub.s32 2048, 2048
          %510 = vsyncadd %s504, %s509
          %s511 = smul.addr %s33, 16
          %s512 = smul.addr %s511, 128
          %s513 = scalar_lea.hbm %s0, %s512
          %s514 = sshll.u32 %s507, 4
          %s515 = int_to_ptr.vmem [resolvable:$true] %s514
          %520 = dma.hbm_to_vmem [thread:$0]  %s513, 2048, %s515, %s504, 128, 128, 8
        $region60: #{tpu_custom_call.1} parent=55 // pred_fallthru
          _
        // Predicated region
        $region61: #{tpu_custom_call.1} parent=55 // pred_check
          %p521 = pneg %p79
        $region62: #{tpu_custom_call.1} parent=55 // pred_check_branch
          %523 = sbr.rel (%p521) target = $region64
        $region63: #{tpu_custom_call.1} parent=55 // pred_region
          %p524 = scmp.lt.s32.totalorder %s33, 1
          %s525 = scalar_select %p524, %s33, 1
          %s526 = smul.addr %s525, 4
          %s527 = smul.addr %s526, 8
          %s528 = scalar_lea.vmem %s1, %s527
        $region64: #{tpu_custom_call.1} parent=55 // pred_fallthru
          _
        // Predicated region
        $region65: #{tpu_custom_call.1} parent=55 // pred_check
          %p529 = pneg %p105
        $region66: #{tpu_custom_call.1} parent=55 // pred_check_branch
          %531 = sbr.rel (%p529) target = $region68
        $region67: #{tpu_custom_call.1} parent=55 // pred_region
          %p532 = scmp.lt.s32.totalorder %s33, 1
          %s533 = scalar_select %p532, %s33, 1
          %s534 = smul.addr %s533, 2
          %s535 = smul.addr %s534, 8
          %s536 = scalar_lea.vmem %s2, %s535
        $region68: #{tpu_custom_call.1} parent=55 // pred_fallthru
          _
        // Predicated region
        $region69: #{tpu_custom_call.1} parent=55 // pred_check
          %p537 = pneg %p131
        $region70: #{tpu_custom_call.1} parent=55 // pred_check_branch
          %539 = sbr.rel (%p537) target = $region72
        $region71: #{tpu_custom_call.1} parent=55 // pred_region
          %p540 = scmp.lt.s32.totalorder %s33, 1
          %s541 = scalar_select %p540, %s33, 1
          %s542 = smul.addr %s541, 2
          %s543 = smul.addr %s542, 4
          %s544 = scalar_lea.vmem %s3, %s543
        $region72: #{tpu_custom_call.1} parent=55 // pred_fallthru
          _
        // Predicated region
        $region73: #{tpu_custom_call.1} parent=55 // pred_check
          %p545 = pneg %p157
        $region74: #{tpu_custom_call.1} parent=55 // pred_check_branch
          %547 = sbr.rel (%p545) target = $region76
        $region75: #{tpu_custom_call.1} parent=55 // pred_region
          %p548 = scmp.lt.s32.totalorder %s33, 1
          %s549 = scalar_select %p548, %s33, 1
          %s550 = smul.addr %s549, 2
          %s551 = smul.addr %s550, 2
          %s552 = scalar_lea.vmem %s4, %s551
        $region76: #{tpu_custom_call.1} parent=55 // pred_fallthru
          _
        // Predicated region
        $region77: #{tpu_custom_call.1} parent=55 // pred_check
          %p553 = pneg %p183
        $region78: #{tpu_custom_call.1} parent=55 // pred_check_branch
          %555 = sbr.rel (%p553) target = $region80
        $region79: #{tpu_custom_call.1} parent=55 // pred_region
          %p556 = scmp.lt.s32.totalorder %s33, 1
          %s557 = scalar_select %p556, %s33, 1
          %s558 = smul.addr %s557, 2
          %s559 = scalar_lea.vmem %s5, %s558
        $region80: #{tpu_custom_call.1} parent=55 // pred_fallthru
          _
      $region56: #{tpu_custom_call.1} parent=5 // pred_fallthru
        _
      %p560 = scmp.le.s32.totalorder 1, %s33
      %p561 = scmp.lt.s32.totalorder %s33, 3
      %p562 = pnand %p560, %p561
      %p563 = pneg %p562
      // Predicated region
      $region81: #{tpu_custom_call.1} parent=5 // pred_check
        _
      $region82: #{tpu_custom_call.1} parent=5 // pred_check_branch
        %565 = sbr.rel (%p562) target = $region84
      $region83: #{tpu_custom_call.1} parent=5 // pred_region
        %s566 = ssub.s32 %s33, 1
        %s567 = sand.u32 %s46, 1
        %s568 = scalar_lea.sflag [#allocation3], %s567
        %s569 = sand.u32 %s46, 1
        %s570 = smul.addr %s569, 128
        %s571 = scalar_lea.vmem [#allocation2], %s570
        // Predicated region
        $region85: #{tpu_custom_call.1} parent=83 // pred_check
          %p572 = pneg %p59
        $region86: #{tpu_custom_call.1} parent=83 // pred_check_branch
          %574 = sbr.rel (%p572) target = $region88
        $region87: #{tpu_custom_call.1} parent=83 // pred_region
          %575 = dma.done %s568, 2048
        $region88: #{tpu_custom_call.1} parent=83 // pred_fallthru
          _
        %s576 = sand.u32 %s46, 1
        %s577 = scalar_lea.sflag [#allocation3], %s576
        %s578 = sand.u32 %s46, 1
        %s579 = smul.addr %s578, 128
        %s580 = scalar_lea.vmem [#allocation2], %s579
        %p581 = pneg %p59
        %p582 = pneg %p56
        %p583 = scmp.lt.s32.totalorder %s38, 1
        %s584 = scalar_select %p583, %s38, 1
        %s585 = smul.addr %s584, 4
        %s586 = smul.addr %s585, 8
        %s587 = scalar_lea.vmem %s1, %s586
        %p588 = pneg %p85
        %p589 = pneg %p82
        %p590 = scmp.lt.s32.totalorder %s38, 1
        %s591 = scalar_select %p590, %s38, 1
        %s592 = smul.addr %s591, 2
        %s593 = smul.addr %s592, 8
        %s594 = scalar_lea.vmem %s2, %s593
        %p595 = pneg %p111
        %p596 = pneg %p108
        %p597 = scmp.lt.s32.totalorder %s38, 1
        %s598 = scalar_select %p597, %s38, 1
        %s599 = smul.addr %s598, 2
        %s600 = smul.addr %s599, 4
        %s601 = scalar_lea.vmem %s3, %s600
        %p602 = pneg %p137
        %p603 = pneg %p134
        %p604 = scmp.lt.s32.totalorder %s38, 1
        %s605 = scalar_select %p604, %s38, 1
        %s606 = smul.addr %s605, 2
        %s607 = smul.addr %s606, 2
        %s608 = scalar_lea.vmem %s4, %s607
        %p609 = pneg %p163
        %p610 = pneg %p160
        %p611 = scmp.lt.s32.totalorder %s38, 1
        %s612 = scalar_select %p611, %s38, 1
        %s613 = smul.addr %s612, 2
        %s614 = scalar_lea.vmem %s5, %s613
        %p615 = pneg %p189
        %p616 = pneg %p186
        %p617 = pneg %p210
        %p618 = pneg %p207
        %p619 = pneg %p231
        %p620 = pneg %p228
        %p621 = pneg %p252
        %p622 = pneg %p249
        %p623 = pneg %p273
        %p624 = pneg %p270
        %p625 = pneg %p294
        %p626 = pneg %p291
        %p627 = pneg %p315
        %p628 = pneg %p312
        %p629 = pneg %p336
        %p630 = pneg %p333
        %p631 = pneg %p357
        %p632 = pneg %p354
        %p633 = pneg %p378
        %p634 = pneg %p375
        %p635 = pneg %p399
        %p636 = pneg %p396
        %p637 = pneg %p425
        %p638 = pneg %p422
        %s639 = sand.u32 %s412, 1
        %s640 = scalar_lea.sflag [#allocation4], %s639
        %s641 = sand.u32 %s412, 1
        %s642 = smul.addr %s641, 8
        %s643 = scalar_lea.vmem [#allocation5], %s642
        %p644 = pneg %p451
        %p645 = pneg %p448
        %s646 = sand.u32 %s438, 1
        %s647 = scalar_lea.sflag [#allocation7], %s646
        %s648 = sand.u32 %s438, 1
        %s649 = smul.addr %s648, 8
        %s650 = scalar_lea.vmem [#allocation6], %s649
        %p651 = scmp.lt.s32.totalorder %s38, 1
        %s652 = scalar_select %p651, %s38, 1
        %s653 = smul.addr %s652, 4
        %s654 = smul.addr %s653, 8
        %s655 = scalar_lea.vmem %s1, %s654
        %p656 = scmp.lt.s32.totalorder %s38, 1
        %s657 = scalar_select %p656, %s38, 1
        %s658 = smul.addr %s657, 2
        %s659 = smul.addr %s658, 8
        %s660 = scalar_lea.vmem %s2, %s659
        %p661 = scmp.lt.s32.totalorder %s38, 1
        %s662 = scalar_select %p661, %s38, 1
        %s663 = smul.addr %s662, 2
        %s664 = smul.addr %s663, 4
        %s665 = scalar_lea.vmem %s3, %s664
        %p666 = scmp.lt.s32.totalorder %s38, 1
        %s667 = scalar_select %p666, %s38, 1
        %s668 = smul.addr %s667, 2
        %s669 = smul.addr %s668, 2
        %s670 = scalar_lea.vmem %s4, %s669
        %p671 = scmp.lt.s32.totalorder %s38, 1
        %s672 = scalar_select %p671, %s38, 1
        %s673 = smul.addr %s672, 2
        %s674 = scalar_lea.vmem %s5, %s673
        %v675 = vld [vmem:[%s6] sm:$0xff]
        %v676 = vld [vmem:[%s6 + $0x8] sm:$0xff]
        %v677 = vld [vmem:[%s11] sm:$0xff]
        %v678 = vld [vmem:[%s11 + $0x8] sm:$0xff]
        %v679 = vld [vmem:[%s11 + $0x10] sm:$0xff]
        %v680 = vld [vmem:[%s11 + $0x18] sm:$0xff]
        %v681 = vld [vmem:[%s11 + $0x20] sm:$0xff]
        %v682 = vld [vmem:[%s11 + $0x28] sm:$0xff]
        %v683 = vld [vmem:[%s11 + $0x30] sm:$0xff]
        %v684 = vld [vmem:[%s11 + $0x38] sm:$0xff]
        %v685 = vld [vmem:[%s571] sm:$0xff]
        %v686 = vld [vmem:[%s571 + $0x8] sm:$0xff]
        %v687 = vld [vmem:[%s571 + $0x10] sm:$0xff]
        %v688 = vld [vmem:[%s571 + $0x18] sm:$0xff]
        %v689 = vld [vmem:[%s571 + $0x20] sm:$0xff]
        %v690 = vld [vmem:[%s571 + $0x28] sm:$0xff]
        %v691 = vld [vmem:[%s571 + $0x30] sm:$0xff]
        %v692 = vld [vmem:[%s571 + $0x38] sm:$0xff]
        %vm693 = vcmask 523264
        %v695 = vsel %vm693, %v675, 0
        %v698 = vsel %vm693, %v676, 0
        %700 = vmatprep.subr.mxu0 0.0
        %701 = vmatpush1.msra.mxu0 0.0
        %702 = vmatprep.subr.mxu0 0.0
        %703 = vmatpush1.msra.mxu0 0.0
        %704 = vmatprep.subr.mxu0 0.0
        %705 = vmatpush1.msra.mxu0 0.0
        %706 = vmatprep.subr.mxu0 0.0
        %707 = vmatpush1.msra.mxu0 0.0
        %708 = vmatprep.subr.mxu0 0.0
        %709 = vmatpush1.msra.mxu0 0.0
        %710 = vmatprep.subr.mxu0 0.0
        %711 = vmatpush1.msra.mxu0 0.0
        %712 = vmatprep.subr.mxu0 0.0
        %713 = vmatpush1.msra.mxu0 0.0
        %714 = vmatprep.subr.mxu0 0.0
        %715 = vmatpush1.msra.mxu0 0.0
        %716 = vmatprep.subr.mxu0 0.0
        %717 = vmatpush1.msra.mxu0 %v692
        %718 = vmatprep.subr.mxu0 0.0
        %719 = vmatpush1.msra.mxu0 %v691
        %720 = vmatprep.subr.mxu0 0.0
        %721 = vmatpush1.msra.mxu0 %v690
        %722 = vmatprep.subr.mxu0 0.0
        %723 = vmatpush1.msra.mxu0 %v689
        %724 = vmatprep.subr.mxu0 0.0
        %725 = vmatpush1.msra.mxu0 %v688
        %726 = vmatprep.subr.mxu0 0.0
        %727 = vmatpush1.msra.mxu0 %v687
        %728 = vmatprep.subr.mxu0 0.0
        %729 = vmatpush1.msra.mxu0 %v686
        %730 = vmatprep.subr.mxu0 0.0
        %731 = vmatpush1.msra.mxu0 %v685
        %732 = vmatprep.subr.mxu0 0.0
        %733 = vmatpush2.msra.mxu0 0.0
        %734 = vmatprep.subr.mxu0 0.0
        %735 = vmatpush2.msra.mxu0 0.0
        %736 = vmatprep.subr.mxu0 0.0
        %737 = vmatpush2.msra.mxu0 0.0
        %738 = vmatprep.subr.mxu0 0.0
        %739 = vmatpush2.msra.mxu0 0.0
        %740 = vmatprep.subr.mxu0 0.0
        %741 = vmatpush2.msra.mxu0 0.0
        %742 = vmatprep.subr.mxu0 0.0
        %743 = vmatpush2.msra.mxu0 0.0
        %744 = vmatprep.subr.mxu0 0.0
        %745 = vmatpush2.msra.mxu0 0.0
        %746 = vmatprep.subr.mxu0 0.0
        %747 = vmatpush2.msra.mxu0 0.0
        %748 = vmatprep.subr.mxu0 0.0
        %749 = vmatpush2.msra.mxu0 0.0
        %750 = vmatprep.subr.mxu0 0.0
        %751 = vmatpush2.msra.mxu0 0.0
        %752 = vmatprep.subr.mxu0 0.0
        %753 = vmatpush2.msra.mxu0 0.0
        %754 = vmatprep.subr.mxu0 0.0
        %755 = vmatpush2.msra.mxu0 0.0
        %756 = vmatprep.subr.mxu0 0.0
        %757 = vmatpush2.msra.mxu0 0.0
        %758 = vmatprep.subr.mxu0 0.0
        %759 = vmatpush2.msra.mxu0 0.0
        %760 = vmatprep.subr.mxu0 0.0
        %761 = vmatpush2.msra.mxu0 0.0
        %762 = vmatprep.subr.mxu0 0.0
        %763 = vmatpush2.msra.mxu0 0.0
        %764 = vmatprep.mubr.f32.mxu0 0.0
        %765 = vmatmul.mubr.f32.gmra.mxu0 %v695
        %v766 = vpop.f32.mrf.mxu0
        %v767 = vadd.f32 0.0, %v766
        %v768 = vpop.f32.mrf.mxu0
        %769 = vmatprep.mubr.f32.mxu0 0.0
        %770 = vmatmul.mubr.f32.gmra.mxu0 %v698
        %v771 = vpop.f32.mrf.mxu0
        %v772 = vadd.f32 0.0, %v771
        %v773 = vpop.f32.mrf.mxu0
        %774 = vdwg.mxu0
        %v776 = vsel %vm693, %v767, 0
        %v779 = vsel %vm693, %v772, 0
        %781 = vmatprep.subr.mxu0 0.0
        %782 = vmatpush1.msra.mxu0 0.0
        %783 = vmatprep.subr.mxu0 0.0
        %784 = vmatpush1.msra.mxu0 0.0
        %785 = vmatprep.subr.mxu0 0.0
        %786 = vmatpush1.msra.mxu0 0.0
        %787 = vmatprep.subr.mxu0 0.0
        %788 = vmatpush1.msra.mxu0 0.0
        %789 = vmatprep.subr.mxu0 0.0
        %790 = vmatpush1.msra.mxu0 0.0
        %791 = vmatprep.subr.mxu0 0.0
        %792 = vmatpush1.msra.mxu0 0.0
        %793 = vmatprep.subr.mxu0 0.0
        %794 = vmatpush1.msra.mxu0 0.0
        %795 = vmatprep.subr.mxu0 0.0
        %796 = vmatpush1.msra.mxu0 0.0
        %797 = vmatprep.subr.mxu0 0.0
        %798 = vmatpush1.msra.mxu0 %v684
        %799 = vmatprep.subr.mxu0 0.0
        %800 = vmatpush1.msra.mxu0 %v683
        %801 = vmatprep.subr.mxu0 0.0
        %802 = vmatpush1.msra.mxu0 %v682
        %803 = vmatprep.subr.mxu0 0.0
        %804 = vmatpush1.msra.mxu0 %v681
        %805 = vmatprep.subr.mxu0 0.0
        %806 = vmatpush1.msra.mxu0 %v680
        %807 = vmatprep.subr.mxu0 0.0
        %808 = vmatpush1.msra.mxu0 %v679
        %809 = vmatprep.subr.mxu0 0.0
        %810 = vmatpush1.msra.mxu0 %v678
        %811 = vmatprep.subr.mxu0 0.0
        %812 = vmatpush1.msra.mxu0 %v677
        %813 = vmatprep.subr.mxu0 0.0
        %814 = vmatpush2.msra.mxu0 0.0
        %815 = vmatprep.subr.mxu0 0.0
        %816 = vmatpush2.msra.mxu0 0.0
        %817 = vmatprep.subr.mxu0 0.0
        %818 = vmatpush2.msra.mxu0 0.0
        %819 = vmatprep.subr.mxu0 0.0
        %820 = vmatpush2.msra.mxu0 0.0
        %821 = vmatprep.subr.mxu0 0.0
        %822 = vmatpush2.msra.mxu0 0.0
        %823 = vmatprep.subr.mxu0 0.0
        %824 = vmatpush2.msra.mxu0 0.0
        %825 = vmatprep.subr.mxu0 0.0
        %826 = vmatpush2.msra.mxu0 0.0
        %827 = vmatprep.subr.mxu0 0.0
        %828 = vmatpush2.msra.mxu0 0.0
        %829 = vmatprep.subr.mxu0 0.0
        %830 = vmatpush2.msra.mxu0 0.0
        %831 = vmatprep.subr.mxu0 0.0
        %832 = vmatpush2.msra.mxu0 0.0
        %833 = vmatprep.subr.mxu0 0.0
        %834 = vmatpush2.msra.mxu0 0.0
        %835 = vmatprep.subr.mxu0 0.0
        %836 = vmatpush2.msra.mxu0 0.0
        %837 = vmatprep.subr.mxu0 0.0
        %838 = vmatpush2.msra.mxu0 0.0
        %839 = vmatprep.subr.mxu0 0.0
        %840 = vmatpush2.msra.mxu0 0.0
        %841 = vmatprep.subr.mxu0 0.0
        %842 = vmatpush2.msra.mxu0 0.0
        %843 = vmatprep.subr.mxu0 0.0
        %844 = vmatpush2.msra.mxu0 0.0
        %845 = vmatprep.mubr.f32.mxu0 0.0
        %846 = vmatmul.mubr.f32.gmra.mxu0 %v776
        %v847 = vpop.f32.mrf.mxu0
        %v848 = vadd.f32 0.0, %v847
        %v849 = vpop.f32.mrf.mxu0
        %850 = vmatprep.mubr.f32.mxu0 0.0
        %851 = vmatmul.mubr.f32.gmra.mxu0 %v779
        %v852 = vpop.f32.mrf.mxu0
        %v853 = vadd.f32 0.0, %v852
        %v854 = vpop.f32.mrf.mxu0
        %855 = vdwg.mxu0
        %s856 = scalar_lea.vmem %s571, 64 [#allocation2]
        %v857 = vld [vmem:[%s856] sm:$0xff]
        %v858 = vld [vmem:[%s856 + $0x8] sm:$0xff]
        %v859 = vld [vmem:[%s856 + $0x10] sm:$0xff]
        %v860 = vld [vmem:[%s856 + $0x18] sm:$0xff]
        %v861 = vld [vmem:[%s856 + $0x20] sm:$0xff]
        %v862 = vld [vmem:[%s856 + $0x28] sm:$0xff]
        %v863 = vld [vmem:[%s856 + $0x30] sm:$0xff]
        %v864 = vld [vmem:[%s856 + $0x38] sm:$0xff]
        %865 = vmatprep.subr.mxu0 0.0
        %866 = vmatpush1.msra.mxu0 0.0
        %867 = vmatprep.subr.mxu0 0.0
        %868 = vmatpush1.msra.mxu0 0.0
        %869 = vmatprep.subr.mxu0 0.0
        %870 = vmatpush1.msra.mxu0 0.0
        %871 = vmatprep.subr.mxu0 0.0
        %872 = vmatpush1.msra.mxu0 0.0
        %873 = vmatprep.subr.mxu0 0.0
        %874 = vmatpush1.msra.mxu0 0.0
        %875 = vmatprep.subr.mxu0 0.0
        %876 = vmatpush1.msra.mxu0 0.0
        %877 = vmatprep.subr.mxu0 0.0
        %878 = vmatpush1.msra.mxu0 0.0
        %879 = vmatprep.subr.mxu0 0.0
        %880 = vmatpush1.msra.mxu0 0.0
        %881 = vmatprep.subr.mxu0 0.0
        %882 = vmatpush1.msra.mxu0 %v864
        %883 = vmatprep.subr.mxu0 0.0
        %884 = vmatpush1.msra.mxu0 %v863
        %885 = vmatprep.subr.mxu0 0.0
        %886 = vmatpush1.msra.mxu0 %v862
        %887 = vmatprep.subr.mxu0 0.0
        %888 = vmatpush1.msra.mxu0 %v861
        %889 = vmatprep.subr.mxu0 0.0
        %890 = vmatpush1.msra.mxu0 %v860
        %891 = vmatprep.subr.mxu0 0.0
        %892 = vmatpush1.msra.mxu0 %v859
        %893 = vmatprep.subr.mxu0 0.0
        %894 = vmatpush1.msra.mxu0 %v858
        %895 = vmatprep.subr.mxu0 0.0
        %896 = vmatpush1.msra.mxu0 %v857
        %897 = vmatprep.subr.mxu0 0.0
        %898 = vmatpush2.msra.mxu0 0.0
        %899 = vmatprep.subr.mxu0 0.0
        %900 = vmatpush2.msra.mxu0 0.0
        %901 = vmatprep.subr.mxu0 0.0
        %902 = vmatpush2.msra.mxu0 0.0
        %903 = vmatprep.subr.mxu0 0.0
        %904 = vmatpush2.msra.mxu0 0.0
        %905 = vmatprep.subr.mxu0 0.0
        %906 = vmatpush2.msra.mxu0 0.0
        %907 = vmatprep.subr.mxu0 0.0
        %908 = vmatpush2.msra.mxu0 0.0
        %909 = vmatprep.subr.mxu0 0.0
        %910 = vmatpush2.msra.mxu0 0.0
        %911 = vmatprep.subr.mxu0 0.0
        %912 = vmatpush2.msra.mxu0 0.0
        %913 = vmatprep.subr.mxu0 0.0
        %914 = vmatpush2.msra.mxu0 0.0
        %915 = vmatprep.subr.mxu0 0.0
        %916 = vmatpush2.msra.mxu0 0.0
        %917 = vmatprep.subr.mxu0 0.0
        %918 = vmatpush2.msra.mxu0 0.0
        %919 = vmatprep.subr.mxu0 0.0
        %920 = vmatpush2.msra.mxu0 0.0
        %921 = vmatprep.subr.mxu0 0.0
        %922 = vmatpush2.msra.mxu0 0.0
        %923 = vmatprep.subr.mxu0 0.0
        %924 = vmatpush2.msra.mxu0 0.0
        %925 = vmatprep.subr.mxu0 0.0
        %926 = vmatpush2.msra.mxu0 0.0
        %927 = vmatprep.subr.mxu0 0.0
        %928 = vmatpush2.msra.mxu0 0.0
        %929 = vmatprep.mubr.f32.mxu0 0.0
        %930 = vmatmul.mubr.f32.gmra.mxu0 %v695
        %v931 = vpop.f32.mrf.mxu0
        %v932 = vadd.f32 0.0, %v931
        %v933 = vpop.f32.mrf.mxu0
        %934 = vmatprep.mubr.f32.mxu0 0.0
        %935 = vmatmul.mubr.f32.gmra.mxu0 %v698
        %v936 = vpop.f32.mrf.mxu0
        %v937 = vadd.f32 0.0, %v936
        %v938 = vpop.f32.mrf.mxu0
        %939 = vdwg.mxu0
        %v941 = vsel %vm693, %v932, 0
        %v944 = vsel %vm693, %v937, 0
        %946 = vmatprep.subr.mxu0 0.0
        %947 = vmatpush1.msra.mxu0 0.0
        %948 = vmatprep.subr.mxu0 0.0
        %949 = vmatpush1.msra.mxu0 0.0
        %950 = vmatprep.subr.mxu0 0.0
        %951 = vmatpush1.msra.mxu0 0.0
        %952 = vmatprep.subr.mxu0 0.0
        %953 = vmatpush1.msra.mxu0 0.0
        %954 = vmatprep.subr.mxu0 0.0
        %955 = vmatpush1.msra.mxu0 0.0
        %956 = vmatprep.subr.mxu0 0.0
        %957 = vmatpush1.msra.mxu0 0.0
        %958 = vmatprep.subr.mxu0 0.0
        %959 = vmatpush1.msra.mxu0 0.0
        %960 = vmatprep.subr.mxu0 0.0
        %961 = vmatpush1.msra.mxu0 0.0
        %962 = vmatprep.subr.mxu0 0.0
        %963 = vmatpush1.msra.mxu0 %v684
        %964 = vmatprep.subr.mxu0 0.0
        %965 = vmatpush1.msra.mxu0 %v683
        %966 = vmatprep.subr.mxu0 0.0
        %967 = vmatpush1.msra.mxu0 %v682
        %968 = vmatprep.subr.mxu0 0.0
        %969 = vmatpush1.msra.mxu0 %v681
        %970 = vmatprep.subr.mxu0 0.0
        %971 = vmatpush1.msra.mxu0 %v680
        %972 = vmatprep.subr.mxu0 0.0
        %973 = vmatpush1.msra.mxu0 %v679
        %974 = vmatprep.subr.mxu0 0.0
        %975 = vmatpush1.msra.mxu0 %v678
        %976 = vmatprep.subr.mxu0 0.0
        %977 = vmatpush1.msra.mxu0 %v677
        %978 = vmatprep.subr.mxu0 0.0
        %979 = vmatpush2.msra.mxu0 0.0
        %980 = vmatprep.subr.mxu0 0.0
        %981 = vmatpush2.msra.mxu0 0.0
        %982 = vmatprep.subr.mxu0 0.0
        %983 = vmatpush2.msra.mxu0 0.0
        %984 = vmatprep.subr.mxu0 0.0
        %985 = vmatpush2.msra.mxu0 0.0
        %986 = vmatprep.subr.mxu0 0.0
        %987 = vmatpush2.msra.mxu0 0.0
        %988 = vmatprep.subr.mxu0 0.0
        %989 = vmatpush2.msra.mxu0 0.0
        %990 = vmatprep.subr.mxu0 0.0
        %991 = vmatpush2.msra.mxu0 0.0
        %992 = vmatprep.subr.mxu0 0.0
        %993 = vmatpush2.msra.mxu0 0.0
        %994 = vmatprep.subr.mxu0 0.0
        %995 = vmatpush2.msra.mxu0 0.0
        %996 = vmatprep.subr.mxu0 0.0
        %997 = vmatpush2.msra.mxu0 0.0
        %998 = vmatprep.subr.mxu0 0.0
        %999 = vmatpush2.msra.mxu0 0.0
        %1000 = vmatprep.subr.mxu0 0.0
        %1001 = vmatpush2.msra.mxu0 0.0
        %1002 = vmatprep.subr.mxu0 0.0
        %1003 = vmatpush2.msra.mxu0 0.0
        %1004 = vmatprep.subr.mxu0 0.0
        %1005 = vmatpush2.msra.mxu0 0.0
        %1006 = vmatprep.subr.mxu0 0.0
        %1007 = vmatpush2.msra.mxu0 0.0
        %1008 = vmatprep.subr.mxu0 0.0
        %1009 = vmatpush2.msra.mxu0 0.0
        %1010 = vmatprep.mubr.f32.mxu0 0.0
        %1011 = vmatmul.mubr.f32.gmra.mxu0 %v941
        %v1012 = vpop.f32.mrf.mxu0
        %v1013 = vadd.f32 0.0, %v1012
        %v1014 = vpop.f32.mrf.mxu0
        %1015 = vmatprep.mubr.f32.mxu0 0.0
        %1016 = vmatmul.mubr.f32.gmra.mxu0 %v944
        %v1017 = vpop.f32.mrf.mxu0
        %v1018 = vadd.f32 0.0, %v1017
        %v1019 = vpop.f32.mrf.mxu0
        %1020 = vdwg.mxu0
        %v1021 = vld [vmem:[%s655] sm:$0xff]
        %v1022 = vld [vmem:[%s655 + $0x8] sm:$0xff]
        %v1023 = vsub.f32 %v848, %v1021
        %v1024 = vsub.f32 %v853, %v1022
        %v1025 = vmul.f32 %v1023, %v1023
        %v1026 = vmul.f32 %v1024, %v1024
        %v1027 = vand.u32 2147483647, %v1023
        %v1028 = vand.u32 2147483647, %v1024
        %s1029 = scalar_lea.vmem %s655, 16
        %v1030 = vld [vmem:[%s1029] sm:$0xff]
        %v1031 = vld [vmem:[%s1029 + $0x8] sm:$0xff]
        %v1032 = vsub.f32 %v1013, %v1030
        %v1033 = vsub.f32 %v1018, %v1031
        %v1034 = vmul.f32 %v1032, %v1032
        %v1035 = vmul.f32 %v1033, %v1033
        %v1036 = vadd.f32 %v1025, %v1034
        %v1037 = vadd.f32 %v1026, %v1035
        %v1038 = vand.u32 2147483647, %v1032
        %v1039 = vand.u32 2147483647, %v1033
        %v1040 = vadd.f32 %v1027, %v1038
        %v1041 = vadd.f32 %v1028, %v1039
        %v1042 = vrsqrt.pop %v1036
        %v1043 = vmul.f32 %v1036, %v1042
        %vm1044 = vcmp.eq.f32.partialorder %v1036, inf
        %v1045 = vsel %vm1044, %v1036, %v1043
        %vm1046 = vcmp.eq.f32.partialorder %v1036, 0.0
        %v1047 = vand.u32 %v1036, 2147483648
        %v1048 = vsel %vm1046, %v1047, %v1045
        %v1049 = vrsqrt.pop %v1037
        %v1050 = vmul.f32 %v1037, %v1049
        %vm1051 = vcmp.eq.f32.partialorder %v1037, inf
        %v1052 = vsel %vm1051, %v1037, %v1050
        %vm1053 = vcmp.eq.f32.partialorder %v1037, 0.0
        %v1054 = vand.u32 %v1037, 2147483648
        %v1055 = vsel %vm1053, %v1054, %v1052
        %vm1056 = vcmask 130048
        %v1057 = vsel %vm1056, %v1048, 0.0
        %v1058 = vsel %vm1056, %v1055, 0.0
        %v1059 = vadd.f32 %v1057, %v1058
        %1060 = vadd.xlane.f32.xlu0 %v1059
        %v1061 = vpop.xlane.xlu0 %1060
        %v1062 = vrot.slane %v1061, 4
        %v1063 = vadd.f32 %v1061, %v1062
        %v1064 = vrot.slane %v1063, 2
        %v1065 = vadd.f32 %v1063, %v1064
        %v1066 = vrot.slane %v1065, 1
        %v1067 = vadd.f32 %v1065, %v1066
        %s1068 = vtos %v1067
        %s1069 = smul.f32 %s1068, 0.000625
        %v1070 = vsel %vm1056, %v1040, 0.0
        %v1071 = vsel %vm1056, %v1041, 0.0
        %v1072 = vadd.f32 %v1070, %v1071
        %1073 = vadd.xlane.f32.xlu0 %v1072
        %v1074 = vpop.xlane.xlu0 %1073
        %v1075 = vrot.slane %v1074, 4
        %v1076 = vadd.f32 %v1074, %v1075
        %v1077 = vrot.slane %v1076, 2
        %v1078 = vadd.f32 %v1076, %v1077
        %v1079 = vrot.slane %v1078, 1
        %v1080 = vadd.f32 %v1078, %v1079
        %s1081 = vtos %v1080
        %s1082 = smul.f32 %s1081, 0.0003125
        %s1083 = sadd.f32 %s1082, 0.0
        %s1084 = sadd.f32 %s1069, 0.0
        %v1085 = vld [vmem:[%s7] sm:$0xff]
        %v1086 = vld [vmem:[%s12] sm:$0xff]
        %v1087 = vld [vmem:[%s12 + $0x8] sm:$0xff]
        %v1089 = vsel %vm1056, %v1085, 0
        %1091 = vmatprep.subr.mxu0 0.0
        %1092 = vmatpush1.msra.mxu0 0.0
        %1093 = vmatprep.subr.mxu0 0.0
        %1094 = vmatpush1.msra.mxu0 0.0
        %1095 = vmatprep.subr.mxu0 0.0
        %1096 = vmatpush1.msra.mxu0 0.0
        %1097 = vmatprep.subr.mxu0 0.0
        %1098 = vmatpush1.msra.mxu0 0.0
        %1099 = vmatprep.subr.mxu0 0.0
        %1100 = vmatpush1.msra.mxu0 0.0
        %1101 = vmatprep.subr.mxu0 0.0
        %1102 = vmatpush1.msra.mxu0 0.0
        %1103 = vmatprep.subr.mxu0 0.0
        %1104 = vmatpush1.msra.mxu0 0.0
        %1105 = vmatprep.subr.mxu0 0.0
        %1106 = vmatpush1.msra.mxu0 0.0
        %1107 = vmatprep.subr.mxu0 0.0
        %1108 = vmatpush1.msra.mxu0 0.0
        %1109 = vmatprep.subr.mxu0 0.0
        %1110 = vmatpush1.msra.mxu0 0.0
        %1111 = vmatprep.subr.mxu0 0.0
        %1112 = vmatpush1.msra.mxu0 0.0
        %1113 = vmatprep.subr.mxu0 0.0
        %1114 = vmatpush1.msra.mxu0 0.0
        %1115 = vmatprep.subr.mxu0 0.0
        %1116 = vmatpush1.msra.mxu0 0.0
        %1117 = vmatprep.subr.mxu0 0.0
        %1118 = vmatpush1.msra.mxu0 0.0
        %1119 = vmatprep.subr.mxu0 0.0
        %1120 = vmatpush1.msra.mxu0 %v853
        %1121 = vmatprep.subr.mxu0 0.0
        %1122 = vmatpush1.msra.mxu0 %v848
        %1123 = vmatprep.subr.mxu0 0.0
        %1124 = vmatpush2.msra.mxu0 0.0
        %1125 = vmatprep.subr.mxu0 0.0
        %1126 = vmatpush2.msra.mxu0 0.0
        %1127 = vmatprep.subr.mxu0 0.0
        %1128 = vmatpush2.msra.mxu0 0.0
        %1129 = vmatprep.subr.mxu0 0.0
        %1130 = vmatpush2.msra.mxu0 0.0
        %1131 = vmatprep.subr.mxu0 0.0
        %1132 = vmatpush2.msra.mxu0 0.0
        %1133 = vmatprep.subr.mxu0 0.0
        %1134 = vmatpush2.msra.mxu0 0.0
        %1135 = vmatprep.subr.mxu0 0.0
        %1136 = vmatpush2.msra.mxu0 0.0
        %1137 = vmatprep.subr.mxu0 0.0
        %1138 = vmatpush2.msra.mxu0 0.0
        %1139 = vmatprep.subr.mxu0 0.0
        %1140 = vmatpush2.msra.mxu0 0.0
        %1141 = vmatprep.subr.mxu0 0.0
        %1142 = vmatpush2.msra.mxu0 0.0
        %1143 = vmatprep.subr.mxu0 0.0
        %1144 = vmatpush2.msra.mxu0 0.0
        %1145 = vmatprep.subr.mxu0 0.0
        %1146 = vmatpush2.msra.mxu0 0.0
        %1147 = vmatprep.subr.mxu0 0.0
        %1148 = vmatpush2.msra.mxu0 0.0
        %1149 = vmatprep.subr.mxu0 0.0
        %1150 = vmatpush2.msra.mxu0 0.0
        %1151 = vmatprep.subr.mxu0 0.0
        %1152 = vmatpush2.msra.mxu0 0.0
        %1153 = vmatprep.subr.mxu0 0.0
        %1154 = vmatpush2.msra.mxu0 0.0
        %1155 = vmatprep.mubr.f32.mxu0 0.0
        %1156 = vmatmul.mubr.f32.gmra.mxu0 %v1089
        %v1157 = vpop.f32.mrf.mxu0
        %v1158 = vadd.f32 0.0, %v1157
        %v1159 = vpop.f32.mrf.mxu0
        %1160 = vdwg.mxu0
        %v1162 = vsel %vm1056, %v1158, 0
        %1164 = vmatprep.subr.mxu0 0.0
        %1165 = vmatpush1.msra.mxu0 0.0
        %1166 = vmatprep.subr.mxu0 0.0
        %1167 = vmatpush1.msra.mxu0 0.0
        %1168 = vmatprep.subr.mxu0 0.0
        %1169 = vmatpush1.msra.mxu0 0.0
        %1170 = vmatprep.subr.mxu0 0.0
        %1171 = vmatpush1.msra.mxu0 0.0
        %1172 = vmatprep.subr.mxu0 0.0
        %1173 = vmatpush1.msra.mxu0 0.0
        %1174 = vmatprep.subr.mxu0 0.0
        %1175 = vmatpush1.msra.mxu0 0.0
        %1176 = vmatprep.subr.mxu0 0.0
        %1177 = vmatpush1.msra.mxu0 0.0
        %1178 = vmatprep.subr.mxu0 0.0
        %1179 = vmatpush1.msra.mxu0 0.0
        %1180 = vmatprep.subr.mxu0 0.0
        %1181 = vmatpush1.msra.mxu0 0.0
        %1182 = vmatprep.subr.mxu0 0.0
        %1183 = vmatpush1.msra.mxu0 0.0
        %1184 = vmatprep.subr.mxu0 0.0
        %1185 = vmatpush1.msra.mxu0 0.0
        %1186 = vmatprep.subr.mxu0 0.0
        %1187 = vmatpush1.msra.mxu0 0.0
        %1188 = vmatprep.subr.mxu0 0.0
        %1189 = vmatpush1.msra.mxu0 0.0
        %1190 = vmatprep.subr.mxu0 0.0
        %1191 = vmatpush1.msra.mxu0 0.0
        %1192 = vmatprep.subr.mxu0 0.0
        %1193 = vmatpush1.msra.mxu0 %v1087
        %1194 = vmatprep.subr.mxu0 0.0
        %1195 = vmatpush1.msra.mxu0 %v1086
        %1196 = vmatprep.subr.mxu0 0.0
        %1197 = vmatpush2.msra.mxu0 0.0
        %1198 = vmatprep.subr.mxu0 0.0
        %1199 = vmatpush2.msra.mxu0 0.0
        %1200 = vmatprep.subr.mxu0 0.0
        %1201 = vmatpush2.msra.mxu0 0.0
        %1202 = vmatprep.subr.mxu0 0.0
        %1203 = vmatpush2.msra.mxu0 0.0
        %1204 = vmatprep.subr.mxu0 0.0
        %1205 = vmatpush2.msra.mxu0 0.0
        %1206 = vmatprep.subr.mxu0 0.0
        %1207 = vmatpush2.msra.mxu0 0.0
        %1208 = vmatprep.subr.mxu0 0.0
        %1209 = vmatpush2.msra.mxu0 0.0
        %1210 = vmatprep.subr.mxu0 0.0
        %1211 = vmatpush2.msra.mxu0 0.0
        %1212 = vmatprep.subr.mxu0 0.0
        %1213 = vmatpush2.msra.mxu0 0.0
        %1214 = vmatprep.subr.mxu0 0.0
        %1215 = vmatpush2.msra.mxu0 0.0
        %1216 = vmatprep.subr.mxu0 0.0
        %1217 = vmatpush2.msra.mxu0 0.0
        %1218 = vmatprep.subr.mxu0 0.0
        %1219 = vmatpush2.msra.mxu0 0.0
        %1220 = vmatprep.subr.mxu0 0.0
        %1221 = vmatpush2.msra.mxu0 0.0
        %1222 = vmatprep.subr.mxu0 0.0
        %1223 = vmatpush2.msra.mxu0 0.0
        %1224 = vmatprep.subr.mxu0 0.0
        %1225 = vmatpush2.msra.mxu0 0.0
        %1226 = vmatprep.subr.mxu0 0.0
        %1227 = vmatpush2.msra.mxu0 0.0
        %1228 = vmatprep.mubr.f32.mxu0 0.0
        %1229 = vmatmul.mubr.f32.gmra.mxu0 %v1162
        %v1230 = vpop.f32.mrf.mxu0
        %v1231 = vadd.f32 0.0, %v1230
        %v1232 = vpop.f32.mrf.mxu0
        %1233 = vdwg.mxu0
        %1234 = vmatprep.subr.mxu0 0.0
        %1235 = vmatpush1.msra.mxu0 0.0
        %1236 = vmatprep.subr.mxu0 0.0
        %1237 = vmatpush1.msra.mxu0 0.0
        %1238 = vmatprep.subr.mxu0 0.0
        %1239 = vmatpush1.msra.mxu0 0.0
        %1240 = vmatprep.subr.mxu0 0.0
        %1241 = vmatpush1.msra.mxu0 0.0
        %1242 = vmatprep.subr.mxu0 0.0
        %1243 = vmatpush1.msra.mxu0 0.0
        %1244 = vmatprep.subr.mxu0 0.0
        %1245 = vmatpush1.msra.mxu0 0.0
        %1246 = vmatprep.subr.mxu0 0.0
        %1247 = vmatpush1.msra.mxu0 0.0
        %1248 = vmatprep.subr.mxu0 0.0
        %1249 = vmatpush1.msra.mxu0 0.0
        %1250 = vmatprep.subr.mxu0 0.0
        %1251 = vmatpush1.msra.mxu0 0.0
        %1252 = vmatprep.subr.mxu0 0.0
        %1253 = vmatpush1.msra.mxu0 0.0
        %1254 = vmatprep.subr.mxu0 0.0
        %1255 = vmatpush1.msra.mxu0 0.0
        %1256 = vmatprep.subr.mxu0 0.0
        %1257 = vmatpush1.msra.mxu0 0.0
        %1258 = vmatprep.subr.mxu0 0.0
        %1259 = vmatpush1.msra.mxu0 0.0
        %1260 = vmatprep.subr.mxu0 0.0
        %1261 = vmatpush1.msra.mxu0 0.0
        %1262 = vmatprep.subr.mxu0 0.0
        %1263 = vmatpush1.msra.mxu0 %v1018
        %1264 = vmatprep.subr.mxu0 0.0
        %1265 = vmatpush1.msra.mxu0 %v1013
        %1266 = vmatprep.subr.mxu0 0.0
        %1267 = vmatpush2.msra.mxu0 0.0
        %1268 = vmatprep.subr.mxu0 0.0
        %1269 = vmatpush2.msra.mxu0 0.0
        %1270 = vmatprep.subr.mxu0 0.0
        %1271 = vmatpush2.msra.mxu0 0.0
        %1272 = vmatprep.subr.mxu0 0.0
        %1273 = vmatpush2.msra.mxu0 0.0
        %1274 = vmatprep.subr.mxu0 0.0
        %1275 = vmatpush2.msra.mxu0 0.0
        %1276 = vmatprep.subr.mxu0 0.0
        %1277 = vmatpush2.msra.mxu0 0.0
        %1278 = vmatprep.subr.mxu0 0.0
        %1279 = vmatpush2.msra.mxu0 0.0
        %1280 = vmatprep.subr.mxu0 0.0
        %1281 = vmatpush2.msra.mxu0 0.0
        %1282 = vmatprep.subr.mxu0 0.0
        %1283 = vmatpush2.msra.mxu0 0.0
        %1284 = vmatprep.subr.mxu0 0.0
        %1285 = vmatpush2.msra.mxu0 0.0
        %1286 = vmatprep.subr.mxu0 0.0
        %1287 = vmatpush2.msra.mxu0 0.0
        %1288 = vmatprep.subr.mxu0 0.0
        %1289 = vmatpush2.msra.mxu0 0.0
        %1290 = vmatprep.subr.mxu0 0.0
        %1291 = vmatpush2.msra.mxu0 0.0
        %1292 = vmatprep.subr.mxu0 0.0
        %1293 = vmatpush2.msra.mxu0 0.0
        %1294 = vmatprep.subr.mxu0 0.0
        %1295 = vmatpush2.msra.mxu0 0.0
        %1296 = vmatprep.subr.mxu0 0.0
        %1297 = vmatpush2.msra.mxu0 0.0
        %1298 = vmatprep.mubr.f32.mxu0 0.0
        %1299 = vmatmul.mubr.f32.gmra.mxu0 %v1089
        %v1300 = vpop.f32.mrf.mxu0
        %v1301 = vadd.f32 0.0, %v1300
        %v1302 = vpop.f32.mrf.mxu0
        %1303 = vdwg.mxu0
        %v1305 = vsel %vm1056, %v1301, 0
        %1307 = vmatprep.subr.mxu0 0.0
        %1308 = vmatpush1.msra.mxu0 0.0
        %1309 = vmatprep.subr.mxu0 0.0
        %1310 = vmatpush1.msra.mxu0 0.0
        %1311 = vmatprep.subr.mxu0 0.0
        %1312 = vmatpush1.msra.mxu0 0.0
        %1313 = vmatprep.subr.mxu0 0.0
        %1314 = vmatpush1.msra.mxu0 0.0
        %1315 = vmatprep.subr.mxu0 0.0
        %1316 = vmatpush1.msra.mxu0 0.0
        %1317 = vmatprep.subr.mxu0 0.0
        %1318 = vmatpush1.msra.mxu0 0.0
        %1319 = vmatprep.subr.mxu0 0.0
        %1320 = vmatpush1.msra.mxu0 0.0
        %1321 = vmatprep.subr.mxu0 0.0
        %1322 = vmatpush1.msra.mxu0 0.0
        %1323 = vmatprep.subr.mxu0 0.0
        %1324 = vmatpush1.msra.mxu0 0.0
        %1325 = vmatprep.subr.mxu0 0.0
        %1326 = vmatpush1.msra.mxu0 0.0
        %1327 = vmatprep.subr.mxu0 0.0
        %1328 = vmatpush1.msra.mxu0 0.0
        %1329 = vmatprep.subr.mxu0 0.0
        %1330 = vmatpush1.msra.mxu0 0.0
        %1331 = vmatprep.subr.mxu0 0.0
        %1332 = vmatpush1.msra.mxu0 0.0
        %1333 = vmatprep.subr.mxu0 0.0
        %1334 = vmatpush1.msra.mxu0 0.0
        %1335 = vmatprep.subr.mxu0 0.0
        %1336 = vmatpush1.msra.mxu0 %v1087
        %1337 = vmatprep.subr.mxu0 0.0
        %1338 = vmatpush1.msra.mxu0 %v1086
        %1339 = vmatprep.subr.mxu0 0.0
        %1340 = vmatpush2.msra.mxu0 0.0
        %1341 = vmatprep.subr.mxu0 0.0
        %1342 = vmatpush2.msra.mxu0 0.0
        %1343 = vmatprep.subr.mxu0 0.0
        %1344 = vmatpush2.msra.mxu0 0.0
        %1345 = vmatprep.subr.mxu0 0.0
        %1346 = vmatpush2.msra.mxu0 0.0
        %1347 = vmatprep.subr.mxu0 0.0
        %1348 = vmatpush2.msra.mxu0 0.0
        %1349 = vmatprep.subr.mxu0 0.0
        %1350 = vmatpush2.msra.mxu0 0.0
        %1351 = vmatprep.subr.mxu0 0.0
        %1352 = vmatpush2.msra.mxu0 0.0
        %1353 = vmatprep.subr.mxu0 0.0
        %1354 = vmatpush2.msra.mxu0 0.0
        %1355 = vmatprep.subr.mxu0 0.0
        %1356 = vmatpush2.msra.mxu0 0.0
        %1357 = vmatprep.subr.mxu0 0.0
        %1358 = vmatpush2.msra.mxu0 0.0
        %1359 = vmatprep.subr.mxu0 0.0
        %1360 = vmatpush2.msra.mxu0 0.0
        %1361 = vmatprep.subr.mxu0 0.0
        %1362 = vmatpush2.msra.mxu0 0.0
        %1363 = vmatprep.subr.mxu0 0.0
        %1364 = vmatpush2.msra.mxu0 0.0
        %1365 = vmatprep.subr.mxu0 0.0
        %1366 = vmatpush2.msra.mxu0 0.0
        %1367 = vmatprep.subr.mxu0 0.0
        %1368 = vmatpush2.msra.mxu0 0.0
        %1369 = vmatprep.subr.mxu0 0.0
        %1370 = vmatpush2.msra.mxu0 0.0
        %1371 = vmatprep.mubr.f32.mxu0 0.0
        %1372 = vmatmul.mubr.f32.gmra.mxu0 %v1305
        %v1373 = vpop.f32.mrf.mxu0
        %v1374 = vadd.f32 0.0, %v1373
        %v1375 = vpop.f32.mrf.mxu0
        %1376 = vdwg.mxu0
        %v1377 = vld [vmem:[%s660] sm:$0xff]
        %v1378 = vsub.f32 %v1231, %v1377
        %v1379 = vmul.f32 %v1378, %v1378
        %v1380 = vand.u32 2147483647, %v1378
        %s1381 = scalar_lea.vmem %s660, 8
        %v1382 = vld [vmem:[%s1381] sm:$0xff]
        %v1383 = vsub.f32 %v1374, %v1382
        %v1384 = vmul.f32 %v1383, %v1383
        %v1385 = vadd.f32 %v1379, %v1384
        %v1386 = vand.u32 2147483647, %v1383
        %v1387 = vadd.f32 %v1380, %v1386
        %v1388 = vrsqrt.pop %v1385
        %v1389 = vmul.f32 %v1385, %v1388
        %vm1390 = vcmp.eq.f32.partialorder %v1385, inf
        %v1391 = vsel %vm1390, %v1385, %v1389
        %vm1392 = vcmp.eq.f32.partialorder %v1385, 0.0
        %v1393 = vand.u32 %v1385, 2147483648
        %v1394 = vsel %vm1392, %v1393, %v1391
        %vm1395 = vcmask 64512
        %v1396 = vsel %vm1395, %v1394, 0.0
        %1397 = vadd.xlane.f32.xlu0 %v1396
        %v1398 = vpop.xlane.xlu0 %1397
        %v1399 = vrot.slane %v1398, 4
        %v1400 = vadd.f32 %v1398, %v1399
        %v1401 = vrot.slane %v1400, 2
        %v1402 = vadd.f32 %v1400, %v1401
        %v1403 = vrot.slane %v1402, 1
        %v1404 = vadd.f32 %v1402, %v1403
        %s1405 = vtos %v1404
        %s1406 = smul.f32 %s1405, 0.00125
        %v1407 = vsel %vm1395, %v1387, 0.0
        %1408 = vadd.xlane.f32.xlu0 %v1407
        %v1409 = vpop.xlane.xlu0 %1408
        %v1410 = vrot.slane %v1409, 4
        %v1411 = vadd.f32 %v1409, %v1410
        %v1412 = vrot.slane %v1411, 2
        %v1413 = vadd.f32 %v1411, %v1412
        %v1414 = vrot.slane %v1413, 1
        %v1415 = vadd.f32 %v1413, %v1414
        %s1416 = vtos %v1415
        %s1417 = smul.f32 %s1416, 0.000625
        %s1418 = sadd.f32 %s1083, %s1417
        %s1419 = sadd.f32 %s1084, %s1406
        %v1420 = vld [vmem:[%s8] sm:$0xf]
        %v1421 = vld [vmem:[%s13] sm:$0xff]
        %v1422 = vld [vmem:[%s13 + $0x8] sm:$0xff]
        %v1424 = vsel %vm1056, %v1420, 0
        %1426 = vmatprep.subr.mxu0 0.0
        %1427 = vmatpush1.msra.mxu0 0.0
        %1428 = vmatprep.subr.mxu0 0.0
        %1429 = vmatpush1.msra.mxu0 0.0
        %1430 = vmatprep.subr.mxu0 0.0
        %1431 = vmatpush1.msra.mxu0 0.0
        %1432 = vmatprep.subr.mxu0 0.0
        %1433 = vmatpush1.msra.mxu0 0.0
        %1434 = vmatprep.subr.mxu0 0.0
        %1435 = vmatpush1.msra.mxu0 0.0
        %1436 = vmatprep.subr.mxu0 0.0
        %1437 = vmatpush1.msra.mxu0 0.0
        %1438 = vmatprep.subr.mxu0 0.0
        %1439 = vmatpush1.msra.mxu0 0.0
        %1440 = vmatprep.subr.mxu0 0.0
        %1441 = vmatpush1.msra.mxu0 0.0
        %1442 = vmatprep.subr.mxu0 0.0
        %1443 = vmatpush1.msra.mxu0 0.0
        %1444 = vmatprep.subr.mxu0 0.0
        %1445 = vmatpush1.msra.mxu0 0.0
        %1446 = vmatprep.subr.mxu0 0.0
        %1447 = vmatpush1.msra.mxu0 0.0
        %1448 = vmatprep.subr.mxu0 0.0
        %1449 = vmatpush1.msra.mxu0 0.0
        %1450 = vmatprep.subr.mxu0 0.0
        %1451 = vmatpush1.msra.mxu0 0.0
        %1452 = vmatprep.subr.mxu0 0.0
        %1453 = vmatpush1.msra.mxu0 0.0
        %1454 = vmatprep.subr.mxu0 0.0
        %1455 = vmatpush1.msra.mxu0 %v853
        %1456 = vmatprep.subr.mxu0 0.0
        %1457 = vmatpush1.msra.mxu0 %v848
        %1458 = vmatprep.subr.mxu0 0.0
        %1459 = vmatpush2.msra.mxu0 0.0
        %1460 = vmatprep.subr.mxu0 0.0
        %1461 = vmatpush2.msra.mxu0 0.0
        %1462 = vmatprep.subr.mxu0 0.0
        %1463 = vmatpush2.msra.mxu0 0.0
        %1464 = vmatprep.subr.mxu0 0.0
        %1465 = vmatpush2.msra.mxu0 0.0
        %1466 = vmatprep.subr.mxu0 0.0
        %1467 = vmatpush2.msra.mxu0 0.0
        %1468 = vmatprep.subr.mxu0 0.0
        %1469 = vmatpush2.msra.mxu0 0.0
        %1470 = vmatprep.subr.mxu0 0.0
        %1471 = vmatpush2.msra.mxu0 0.0
        %1472 = vmatprep.subr.mxu0 0.0
        %1473 = vmatpush2.msra.mxu0 0.0
        %1474 = vmatprep.subr.mxu0 0.0
        %1475 = vmatpush2.msra.mxu0 0.0
        %1476 = vmatprep.subr.mxu0 0.0
        %1477 = vmatpush2.msra.mxu0 0.0
        %1478 = vmatprep.subr.mxu0 0.0
        %1479 = vmatpush2.msra.mxu0 0.0
        %1480 = vmatprep.subr.mxu0 0.0
        %1481 = vmatpush2.msra.mxu0 0.0
        %1482 = vmatprep.subr.mxu0 0.0
        %1483 = vmatpush2.msra.mxu0 0.0
        %1484 = vmatprep.subr.mxu0 0.0
        %1485 = vmatpush2.msra.mxu0 0.0
        %1486 = vmatprep.subr.mxu0 0.0
        %1487 = vmatpush2.msra.mxu0 0.0
        %1488 = vmatprep.subr.mxu0 0.0
        %1489 = vmatpush2.msra.mxu0 0.0
        %1490 = vmatprep.mubr.f32.mxu0 0.0
        %1491 = vmatmul.mubr.f32.gmra.mxu0 %v1424
        %v1492 = vpop.f32.mrf.mxu0
        %v1493 = vadd.f32 0.0, %v1492
        %v1494 = vpop.f32.mrf.mxu0
        %1495 = vdwg.mxu0
        %v1497 = vsel %vm1056, %v1493, 0
        %1499 = vmatprep.subr.mxu0 0.0
        %1500 = vmatpush1.msra.mxu0 0.0
        %1501 = vmatprep.subr.mxu0 0.0
        %1502 = vmatpush1.msra.mxu0 0.0
        %1503 = vmatprep.subr.mxu0 0.0
        %1504 = vmatpush1.msra.mxu0 0.0
        %1505 = vmatprep.subr.mxu0 0.0
        %1506 = vmatpush1.msra.mxu0 0.0
        %1507 = vmatprep.subr.mxu0 0.0
        %1508 = vmatpush1.msra.mxu0 0.0
        %1509 = vmatprep.subr.mxu0 0.0
        %1510 = vmatpush1.msra.mxu0 0.0
        %1511 = vmatprep.subr.mxu0 0.0
        %1512 = vmatpush1.msra.mxu0 0.0
        %1513 = vmatprep.subr.mxu0 0.0
        %1514 = vmatpush1.msra.mxu0 0.0
        %1515 = vmatprep.subr.mxu0 0.0
        %1516 = vmatpush1.msra.mxu0 0.0
        %1517 = vmatprep.subr.mxu0 0.0
        %1518 = vmatpush1.msra.mxu0 0.0
        %1519 = vmatprep.subr.mxu0 0.0
        %1520 = vmatpush1.msra.mxu0 0.0
        %1521 = vmatprep.subr.mxu0 0.0
        %1522 = vmatpush1.msra.mxu0 0.0
        %1523 = vmatprep.subr.mxu0 0.0
        %1524 = vmatpush1.msra.mxu0 0.0
        %1525 = vmatprep.subr.mxu0 0.0
        %1526 = vmatpush1.msra.mxu0 0.0
        %1527 = vmatprep.subr.mxu0 0.0
        %1528 = vmatpush1.msra.mxu0 %v1422
        %1529 = vmatprep.subr.mxu0 0.0
        %1530 = vmatpush1.msra.mxu0 %v1421
        %1531 = vmatprep.subr.mxu0 0.0
        %1532 = vmatpush2.msra.mxu0 0.0
        %1533 = vmatprep.subr.mxu0 0.0
        %1534 = vmatpush2.msra.mxu0 0.0
        %1535 = vmatprep.subr.mxu0 0.0
        %1536 = vmatpush2.msra.mxu0 0.0
        %1537 = vmatprep.subr.mxu0 0.0
        %1538 = vmatpush2.msra.mxu0 0.0
        %1539 = vmatprep.subr.mxu0 0.0
        %1540 = vmatpush2.msra.mxu0 0.0
        %1541 = vmatprep.subr.mxu0 0.0
        %1542 = vmatpush2.msra.mxu0 0.0
        %1543 = vmatprep.subr.mxu0 0.0
        %1544 = vmatpush2.msra.mxu0 0.0
        %1545 = vmatprep.subr.mxu0 0.0
        %1546 = vmatpush2.msra.mxu0 0.0
        %1547 = vmatprep.subr.mxu0 0.0
        %1548 = vmatpush2.msra.mxu0 0.0
        %1549 = vmatprep.subr.mxu0 0.0
        %1550 = vmatpush2.msra.mxu0 0.0
        %1551 = vmatprep.subr.mxu0 0.0
        %1552 = vmatpush2.msra.mxu0 0.0
        %1553 = vmatprep.subr.mxu0 0.0
        %1554 = vmatpush2.msra.mxu0 0.0
        %1555 = vmatprep.subr.mxu0 0.0
        %1556 = vmatpush2.msra.mxu0 0.0
        %1557 = vmatprep.subr.mxu0 0.0
        %1558 = vmatpush2.msra.mxu0 0.0
        %1559 = vmatprep.subr.mxu0 0.0
        %1560 = vmatpush2.msra.mxu0 0.0
        %1561 = vmatprep.subr.mxu0 0.0
        %1562 = vmatpush2.msra.mxu0 0.0
        %1563 = vmatprep.mubr.f32.mxu0 0.0
        %1564 = vmatmul.mubr.f32.gmra.mxu0 %v1497
        %v1565 = vpop.f32.mrf.mxu0
        %v1566 = vadd.f32 0.0, %v1565
        %v1567 = vpop.f32.mrf.mxu0
        %1568 = vdwg.mxu0
        %1569 = vmatprep.subr.mxu0 0.0
        %1570 = vmatpush1.msra.mxu0 0.0
        %1571 = vmatprep.subr.mxu0 0.0
        %1572 = vmatpush1.msra.mxu0 0.0
        %1573 = vmatprep.subr.mxu0 0.0
        %1574 = vmatpush1.msra.mxu0 0.0
        %1575 = vmatprep.subr.mxu0 0.0
        %1576 = vmatpush1.msra.mxu0 0.0
        %1577 = vmatprep.subr.mxu0 0.0
        %1578 = vmatpush1.msra.mxu0 0.0
        %1579 = vmatprep.subr.mxu0 0.0
        %1580 = vmatpush1.msra.mxu0 0.0
        %1581 = vmatprep.subr.mxu0 0.0
        %1582 = vmatpush1.msra.mxu0 0.0
        %1583 = vmatprep.subr.mxu0 0.0
        %1584 = vmatpush1.msra.mxu0 0.0
        %1585 = vmatprep.subr.mxu0 0.0
        %1586 = vmatpush1.msra.mxu0 0.0
        %1587 = vmatprep.subr.mxu0 0.0
        %1588 = vmatpush1.msra.mxu0 0.0
        %1589 = vmatprep.subr.mxu0 0.0
        %1590 = vmatpush1.msra.mxu0 0.0
        %1591 = vmatprep.subr.mxu0 0.0
        %1592 = vmatpush1.msra.mxu0 0.0
        %1593 = vmatprep.subr.mxu0 0.0
        %1594 = vmatpush1.msra.mxu0 0.0
        %1595 = vmatprep.subr.mxu0 0.0
        %1596 = vmatpush1.msra.mxu0 0.0
        %1597 = vmatprep.subr.mxu0 0.0
        %1598 = vmatpush1.msra.mxu0 %v1018
        %1599 = vmatprep.subr.mxu0 0.0
        %1600 = vmatpush1.msra.mxu0 %v1013
        %1601 = vmatprep.subr.mxu0 0.0
        %1602 = vmatpush2.msra.mxu0 0.0
        %1603 = vmatprep.subr.mxu0 0.0
        %1604 = vmatpush2.msra.mxu0 0.0
        %1605 = vmatprep.subr.mxu0 0.0
        %1606 = vmatpush2.msra.mxu0 0.0
        %1607 = vmatprep.subr.mxu0 0.0
        %1608 = vmatpush2.msra.mxu0 0.0
        %1609 = vmatprep.subr.mxu0 0.0
        %1610 = vmatpush2.msra.mxu0 0.0
        %1611 = vmatprep.subr.mxu0 0.0
        %1612 = vmatpush2.msra.mxu0 0.0
        %1613 = vmatprep.subr.mxu0 0.0
        %1614 = vmatpush2.msra.mxu0 0.0
        %1615 = vmatprep.subr.mxu0 0.0
        %1616 = vmatpush2.msra.mxu0 0.0
        %1617 = vmatprep.subr.mxu0 0.0
        %1618 = vmatpush2.msra.mxu0 0.0
        %1619 = vmatprep.subr.mxu0 0.0
        %1620 = vmatpush2.msra.mxu0 0.0
        %1621 = vmatprep.subr.mxu0 0.0
        %1622 = vmatpush2.msra.mxu0 0.0
        %1623 = vmatprep.subr.mxu0 0.0
        %1624 = vmatpush2.msra.mxu0 0.0
        %1625 = vmatprep.subr.mxu0 0.0
        %1626 = vmatpush2.msra.mxu0 0.0
        %1627 = vmatprep.subr.mxu0 0.0
        %1628 = vmatpush2.msra.mxu0 0.0
        %1629 = vmatprep.subr.mxu0 0.0
        %1630 = vmatpush2.msra.mxu0 0.0
        %1631 = vmatprep.subr.mxu0 0.0
        %1632 = vmatpush2.msra.mxu0 0.0
        %1633 = vmatprep.mubr.f32.mxu0 0.0
        %1634 = vmatmul.mubr.f32.gmra.mxu0 %v1424
        %v1635 = vpop.f32.mrf.mxu0
        %v1636 = vadd.f32 0.0, %v1635
        %v1637 = vpop.f32.mrf.mxu0
        %1638 = vdwg.mxu0
        %v1640 = vsel %vm1056, %v1636, 0
        %1642 = vmatprep.subr.mxu0 0.0
        %1643 = vmatpush1.msra.mxu0 0.0
        %1644 = vmatprep.subr.mxu0 0.0
        %1645 = vmatpush1.msra.mxu0 0.0
        %1646 = vmatprep.subr.mxu0 0.0
        %1647 = vmatpush1.msra.mxu0 0.0
        %1648 = vmatprep.subr.mxu0 0.0
        %1649 = vmatpush1.msra.mxu0 0.0
        %1650 = vmatprep.subr.mxu0 0.0
        %1651 = vmatpush1.msra.mxu0 0.0
        %1652 = vmatprep.subr.mxu0 0.0
        %1653 = vmatpush1.msra.mxu0 0.0
        %1654 = vmatprep.subr.mxu0 0.0
        %1655 = vmatpush1.msra.mxu0 0.0
        %1656 = vmatprep.subr.mxu0 0.0
        %1657 = vmatpush1.msra.mxu0 0.0
        %1658 = vmatprep.subr.mxu0 0.0
        %1659 = vmatpush1.msra.mxu0 0.0
        %1660 = vmatprep.subr.mxu0 0.0
        %1661 = vmatpush1.msra.mxu0 0.0
        %1662 = vmatprep.subr.mxu0 0.0
        %1663 = vmatpush1.msra.mxu0 0.0
        %1664 = vmatprep.subr.mxu0 0.0
        %1665 = vmatpush1.msra.mxu0 0.0
        %1666 = vmatprep.subr.mxu0 0.0
        %1667 = vmatpush1.msra.mxu0 0.0
        %1668 = vmatprep.subr.mxu0 0.0
        %1669 = vmatpush1.msra.mxu0 0.0
        %1670 = vmatprep.subr.mxu0 0.0
        %1671 = vmatpush1.msra.mxu0 %v1422
        %1672 = vmatprep.subr.mxu0 0.0
        %1673 = vmatpush1.msra.mxu0 %v1421
        %1674 = vmatprep.subr.mxu0 0.0
        %1675 = vmatpush2.msra.mxu0 0.0
        %1676 = vmatprep.subr.mxu0 0.0
        %1677 = vmatpush2.msra.mxu0 0.0
        %1678 = vmatprep.subr.mxu0 0.0
        %1679 = vmatpush2.msra.mxu0 0.0
        %1680 = vmatprep.subr.mxu0 0.0
        %1681 = vmatpush2.msra.mxu0 0.0
        %1682 = vmatprep.subr.mxu0 0.0
        %1683 = vmatpush2.msra.mxu0 0.0
        %1684 = vmatprep.subr.mxu0 0.0
        %1685 = vmatpush2.msra.mxu0 0.0
        %1686 = vmatprep.subr.mxu0 0.0
        %1687 = vmatpush2.msra.mxu0 0.0
        %1688 = vmatprep.subr.mxu0 0.0
        %1689 = vmatpush2.msra.mxu0 0.0
        %1690 = vmatprep.subr.mxu0 0.0
        %1691 = vmatpush2.msra.mxu0 0.0
        %1692 = vmatprep.subr.mxu0 0.0
        %1693 = vmatpush2.msra.mxu0 0.0
        %1694 = vmatprep.subr.mxu0 0.0
        %1695 = vmatpush2.msra.mxu0 0.0
        %1696 = vmatprep.subr.mxu0 0.0
        %1697 = vmatpush2.msra.mxu0 0.0
        %1698 = vmatprep.subr.mxu0 0.0
        %1699 = vmatpush2.msra.mxu0 0.0
        %1700 = vmatprep.subr.mxu0 0.0
        %1701 = vmatpush2.msra.mxu0 0.0
        %1702 = vmatprep.subr.mxu0 0.0
        %1703 = vmatpush2.msra.mxu0 0.0
        %1704 = vmatprep.subr.mxu0 0.0
        %1705 = vmatpush2.msra.mxu0 0.0
        %1706 = vmatprep.mubr.f32.mxu0 0.0
        %1707 = vmatmul.mubr.f32.gmra.mxu0 %v1640
        %v1708 = vpop.f32.mrf.mxu0
        %v1709 = vadd.f32 0.0, %v1708
        %v1710 = vpop.f32.mrf.mxu0
        %1711 = vdwg.mxu0
        %v1712 = vld [vmem:[%s665] sm:$0xf]
        %v1713 = vsub.f32 %v1566, %v1712
        %v1714 = vmul.f32 %v1713, %v1713
        %v1715 = vand.u32 2147483647, %v1713
        %s1716 = scalar_lea.vmem %s665, 4
        %v1717 = vld [vmem:[%s1716] sm:$0xf]
        %v1718 = vsub.f32 %v1709, %v1717
        %v1719 = vmul.f32 %v1718, %v1718
        %v1720 = vadd.f32 %v1714, %v1719
        %v1721 = vand.u32 2147483647, %v1718
        %v1722 = vadd.f32 %v1715, %v1721
        %v1723 = vrsqrt.pop %v1720
        %v1724 = vmul.f32 %v1720, %v1723
        %vm1725 = vcmp.eq.f32.partialorder %v1720, inf
        %v1726 = vsel %vm1725, %v1720, %v1724
        %vm1727 = vcmp.eq.f32.partialorder %v1720, 0.0
        %v1728 = vand.u32 %v1720, 2147483648
        %v1729 = vsel %vm1727, %v1728, %v1726
        %vm1730 = vcmask 27648
        %v1731 = vsel %vm1730, %v1729, 0.0
        %1732 = vadd.xlane.f32.xlu0 %v1731
        %v1733 = vpop.xlane.xlu0 %1732
        %v1734 = vrot.slane %v1733, 4
        %v1735 = vadd.f32 %v1733, %v1734
        %v1736 = vrot.slane %v1735, 2
        %v1737 = vadd.f32 %v1735, %v1736
        %v1738 = vrot.slane %v1737, 1
        %v1739 = vadd.f32 %v1737, %v1738
        %s1740 = vtos %v1739
        %s1741 = smul.f32 %s1740, 0.0025
        %v1742 = vsel %vm1730, %v1722, 0.0
        %1743 = vadd.xlane.f32.xlu0 %v1742
        %v1744 = vpop.xlane.xlu0 %1743
        %v1745 = vrot.slane %v1744, 4
        %v1746 = vadd.f32 %v1744, %v1745
        %v1747 = vrot.slane %v1746, 2
        %v1748 = vadd.f32 %v1746, %v1747
        %v1749 = vrot.slane %v1748, 1
        %v1750 = vadd.f32 %v1748, %v1749
        %s1751 = vtos %v1750
        %s1752 = smul.f32 %s1751, 0.00125
        %s1753 = sadd.f32 %s1418, %s1752
        %s1754 = sadd.f32 %s1419, %s1741
        %v1755 = vld [vmem:[%s9] sm:$0x3]
        %v1756 = vld [vmem:[%s14] sm:$0xff]
        %v1757 = vld [vmem:[%s14 + $0x8] sm:$0xff]
        %v1759 = vsel %vm1056, %v1755, 0
        %1761 = vmatprep.subr.mxu0 0.0
        %1762 = vmatpush1.msra.mxu0 0.0
        %1763 = vmatprep.subr.mxu0 0.0
        %1764 = vmatpush1.msra.mxu0 0.0
        %1765 = vmatprep.subr.mxu0 0.0
        %1766 = vmatpush1.msra.mxu0 0.0
        %1767 = vmatprep.subr.mxu0 0.0
        %1768 = vmatpush1.msra.mxu0 0.0
        %1769 = vmatprep.subr.mxu0 0.0
        %1770 = vmatpush1.msra.mxu0 0.0
        %1771 = vmatprep.subr.mxu0 0.0
        %1772 = vmatpush1.msra.mxu0 0.0
        %1773 = vmatprep.subr.mxu0 0.0
        %1774 = vmatpush1.msra.mxu0 0.0
        %1775 = vmatprep.subr.mxu0 0.0
        %1776 = vmatpush1.msra.mxu0 0.0
        %1777 = vmatprep.subr.mxu0 0.0
        %1778 = vmatpush1.msra.mxu0 0.0
        %1779 = vmatprep.subr.mxu0 0.0
        %1780 = vmatpush1.msra.mxu0 0.0
        %1781 = vmatprep.subr.mxu0 0.0
        %1782 = vmatpush1.msra.mxu0 0.0
        %1783 = vmatprep.subr.mxu0 0.0
        %1784 = vmatpush1.msra.mxu0 0.0
        %1785 = vmatprep.subr.mxu0 0.0
        %1786 = vmatpush1.msra.mxu0 0.0
        %1787 = vmatprep.subr.mxu0 0.0
        %1788 = vmatpush1.msra.mxu0 0.0
        %1789 = vmatprep.subr.mxu0 0.0
        %1790 = vmatpush1.msra.mxu0 %v853
        %1791 = vmatprep.subr.mxu0 0.0
        %1792 = vmatpush1.msra.mxu0 %v848
        %1793 = vmatprep.subr.mxu0 0.0
        %1794 = vmatpush2.msra.mxu0 0.0
        %1795 = vmatprep.subr.mxu0 0.0
        %1796 = vmatpush2.msra.mxu0 0.0
        %1797 = vmatprep.subr.mxu0 0.0
        %1798 = vmatpush2.msra.mxu0 0.0
        %1799 = vmatprep.subr.mxu0 0.0
        %1800 = vmatpush2.msra.mxu0 0.0
        %1801 = vmatprep.subr.mxu0 0.0
        %1802 = vmatpush2.msra.mxu0 0.0
        %1803 = vmatprep.subr.mxu0 0.0
        %1804 = vmatpush2.msra.mxu0 0.0
        %1805 = vmatprep.subr.mxu0 0.0
        %1806 = vmatpush2.msra.mxu0 0.0
        %1807 = vmatprep.subr.mxu0 0.0
        %1808 = vmatpush2.msra.mxu0 0.0
        %1809 = vmatprep.subr.mxu0 0.0
        %1810 = vmatpush2.msra.mxu0 0.0
        %1811 = vmatprep.subr.mxu0 0.0
        %1812 = vmatpush2.msra.mxu0 0.0
        %1813 = vmatprep.subr.mxu0 0.0
        %1814 = vmatpush2.msra.mxu0 0.0
        %1815 = vmatprep.subr.mxu0 0.0
        %1816 = vmatpush2.msra.mxu0 0.0
        %1817 = vmatprep.subr.mxu0 0.0
        %1818 = vmatpush2.msra.mxu0 0.0
        %1819 = vmatprep.subr.mxu0 0.0
        %1820 = vmatpush2.msra.mxu0 0.0
        %1821 = vmatprep.subr.mxu0 0.0
        %1822 = vmatpush2.msra.mxu0 0.0
        %1823 = vmatprep.subr.mxu0 0.0
        %1824 = vmatpush2.msra.mxu0 0.0
        %1825 = vmatprep.mubr.f32.mxu0 0.0
        %1826 = vmatmul.mubr.f32.gmra.mxu0 %v1759
        %v1827 = vpop.f32.mrf.mxu0
        %v1828 = vadd.f32 0.0, %v1827
        %v1829 = vpop.f32.mrf.mxu0
        %1830 = vdwg.mxu0
        %v1832 = vsel %vm1056, %v1828, 0
        %1834 = vmatprep.subr.mxu0 0.0
        %1835 = vmatpush1.msra.mxu0 0.0
        %1836 = vmatprep.subr.mxu0 0.0
        %1837 = vmatpush1.msra.mxu0 0.0
        %1838 = vmatprep.subr.mxu0 0.0
        %1839 = vmatpush1.msra.mxu0 0.0
        %1840 = vmatprep.subr.mxu0 0.0
        %1841 = vmatpush1.msra.mxu0 0.0
        %1842 = vmatprep.subr.mxu0 0.0
        %1843 = vmatpush1.msra.mxu0 0.0
        %1844 = vmatprep.subr.mxu0 0.0
        %1845 = vmatpush1.msra.mxu0 0.0
        %1846 = vmatprep.subr.mxu0 0.0
        %1847 = vmatpush1.msra.mxu0 0.0
        %1848 = vmatprep.subr.mxu0 0.0
        %1849 = vmatpush1.msra.mxu0 0.0
        %1850 = vmatprep.subr.mxu0 0.0
        %1851 = vmatpush1.msra.mxu0 0.0
        %1852 = vmatprep.subr.mxu0 0.0
        %1853 = vmatpush1.msra.mxu0 0.0
        %1854 = vmatprep.subr.mxu0 0.0
        %1855 = vmatpush1.msra.mxu0 0.0
        %1856 = vmatprep.subr.mxu0 0.0
        %1857 = vmatpush1.msra.mxu0 0.0
        %1858 = vmatprep.subr.mxu0 0.0
        %1859 = vmatpush1.msra.mxu0 0.0
        %1860 = vmatprep.subr.mxu0 0.0
        %1861 = vmatpush1.msra.mxu0 0.0
        %1862 = vmatprep.subr.mxu0 0.0
        %1863 = vmatpush1.msra.mxu0 %v1757
        %1864 = vmatprep.subr.mxu0 0.0
        %1865 = vmatpush1.msra.mxu0 %v1756
        %1866 = vmatprep.subr.mxu0 0.0
        %1867 = vmatpush2.msra.mxu0 0.0
        %1868 = vmatprep.subr.mxu0 0.0
        %1869 = vmatpush2.msra.mxu0 0.0
        %1870 = vmatprep.subr.mxu0 0.0
        %1871 = vmatpush2.msra.mxu0 0.0
        %1872 = vmatprep.subr.mxu0 0.0
        %1873 = vmatpush2.msra.mxu0 0.0
        %1874 = vmatprep.subr.mxu0 0.0
        %1875 = vmatpush2.msra.mxu0 0.0
        %1876 = vmatprep.subr.mxu0 0.0
        %1877 = vmatpush2.msra.mxu0 0.0
        %1878 = vmatprep.subr.mxu0 0.0
        %1879 = vmatpush2.msra.mxu0 0.0
        %1880 = vmatprep.subr.mxu0 0.0
        %1881 = vmatpush2.msra.mxu0 0.0
        %1882 = vmatprep.subr.mxu0 0.0
        %1883 = vmatpush2.msra.mxu0 0.0
        %1884 = vmatprep.subr.mxu0 0.0
        %1885 = vmatpush2.msra.mxu0 0.0
        %1886 = vmatprep.subr.mxu0 0.0
        %1887 = vmatpush2.msra.mxu0 0.0
        %1888 = vmatprep.subr.mxu0 0.0
        %1889 = vmatpush2.msra.mxu0 0.0
        %1890 = vmatprep.subr.mxu0 0.0
        %1891 = vmatpush2.msra.mxu0 0.0
        %1892 = vmatprep.subr.mxu0 0.0
        %1893 = vmatpush2.msra.mxu0 0.0
        %1894 = vmatprep.subr.mxu0 0.0
        %1895 = vmatpush2.msra.mxu0 0.0
        %1896 = vmatprep.subr.mxu0 0.0
        %1897 = vmatpush2.msra.mxu0 0.0
        %1898 = vmatprep.mubr.f32.mxu0 0.0
        %1899 = vmatmul.mubr.f32.gmra.mxu0 %v1832
        %v1900 = vpop.f32.mrf.mxu0
        %v1901 = vadd.f32 0.0, %v1900
        %v1902 = vpop.f32.mrf.mxu0
        %1903 = vdwg.mxu0
        %1904 = vmatprep.subr.mxu0 0.0
        %1905 = vmatpush1.msra.mxu0 0.0
        %1906 = vmatprep.subr.mxu0 0.0
        %1907 = vmatpush1.msra.mxu0 0.0
        %1908 = vmatprep.subr.mxu0 0.0
        %1909 = vmatpush1.msra.mxu0 0.0
        %1910 = vmatprep.subr.mxu0 0.0
        %1911 = vmatpush1.msra.mxu0 0.0
        %1912 = vmatprep.subr.mxu0 0.0
        %1913 = vmatpush1.msra.mxu0 0.0
        %1914 = vmatprep.subr.mxu0 0.0
        %1915 = vmatpush1.msra.mxu0 0.0
        %1916 = vmatprep.subr.mxu0 0.0
        %1917 = vmatpush1.msra.mxu0 0.0
        %1918 = vmatprep.subr.mxu0 0.0
        %1919 = vmatpush1.msra.mxu0 0.0
        %1920 = vmatprep.subr.mxu0 0.0
        %1921 = vmatpush1.msra.mxu0 0.0
        %1922 = vmatprep.subr.mxu0 0.0
        %1923 = vmatpush1.msra.mxu0 0.0
        %1924 = vmatprep.subr.mxu0 0.0
        %1925 = vmatpush1.msra.mxu0 0.0
        %1926 = vmatprep.subr.mxu0 0.0
        %1927 = vmatpush1.msra.mxu0 0.0
        %1928 = vmatprep.subr.mxu0 0.0
        %1929 = vmatpush1.msra.mxu0 0.0
        %1930 = vmatprep.subr.mxu0 0.0
        %1931 = vmatpush1.msra.mxu0 0.0
        %1932 = vmatprep.subr.mxu0 0.0
        %1933 = vmatpush1.msra.mxu0 %v1018
        %1934 = vmatprep.subr.mxu0 0.0
        %1935 = vmatpush1.msra.mxu0 %v1013
        %1936 = vmatprep.subr.mxu0 0.0
        %1937 = vmatpush2.msra.mxu0 0.0
        %1938 = vmatprep.subr.mxu0 0.0
        %1939 = vmatpush2.msra.mxu0 0.0
        %1940 = vmatprep.subr.mxu0 0.0
        %1941 = vmatpush2.msra.mxu0 0.0
        %1942 = vmatprep.subr.mxu0 0.0
        %1943 = vmatpush2.msra.mxu0 0.0
        %1944 = vmatprep.subr.mxu0 0.0
        %1945 = vmatpush2.msra.mxu0 0.0
        %1946 = vmatprep.subr.mxu0 0.0
        %1947 = vmatpush2.msra.mxu0 0.0
        %1948 = vmatprep.subr.mxu0 0.0
        %1949 = vmatpush2.msra.mxu0 0.0
        %1950 = vmatprep.subr.mxu0 0.0
        %1951 = vmatpush2.msra.mxu0 0.0
        %1952 = vmatprep.subr.mxu0 0.0
        %1953 = vmatpush2.msra.mxu0 0.0
        %1954 = vmatprep.subr.mxu0 0.0
        %1955 = vmatpush2.msra.mxu0 0.0
        %1956 = vmatprep.subr.mxu0 0.0
        %1957 = vmatpush2.msra.mxu0 0.0
        %1958 = vmatprep.subr.mxu0 0.0
        %1959 = vmatpush2.msra.mxu0 0.0
        %1960 = vmatprep.subr.mxu0 0.0
        %1961 = vmatpush2.msra.mxu0 0.0
        %1962 = vmatprep.subr.mxu0 0.0
        %1963 = vmatpush2.msra.mxu0 0.0
        %1964 = vmatprep.subr.mxu0 0.0
        %1965 = vmatpush2.msra.mxu0 0.0
        %1966 = vmatprep.subr.mxu0 0.0
        %1967 = vmatpush2.msra.mxu0 0.0
        %1968 = vmatprep.mubr.f32.mxu0 0.0
        %1969 = vmatmul.mubr.f32.gmra.mxu0 %v1759
        %v1970 = vpop.f32.mrf.mxu0
        %v1971 = vadd.f32 0.0, %v1970
        %v1972 = vpop.f32.mrf.mxu0
        %1973 = vdwg.mxu0
        %v1975 = vsel %vm1056, %v1971, 0
        %1977 = vmatprep.subr.mxu0 0.0
        %1978 = vmatpush1.msra.mxu0 0.0
        %1979 = vmatprep.subr.mxu0 0.0
        %1980 = vmatpush1.msra.mxu0 0.0
        %1981 = vmatprep.subr.mxu0 0.0
        %1982 = vmatpush1.msra.mxu0 0.0
        %1983 = vmatprep.subr.mxu0 0.0
        %1984 = vmatpush1.msra.mxu0 0.0
        %1985 = vmatprep.subr.mxu0 0.0
        %1986 = vmatpush1.msra.mxu0 0.0
        %1987 = vmatprep.subr.mxu0 0.0
        %1988 = vmatpush1.msra.mxu0 0.0
        %1989 = vmatprep.subr.mxu0 0.0
        %1990 = vmatpush1.msra.mxu0 0.0
        %1991 = vmatprep.subr.mxu0 0.0
        %1992 = vmatpush1.msra.mxu0 0.0
        %1993 = vmatprep.subr.mxu0 0.0
        %1994 = vmatpush1.msra.mxu0 0.0
        %1995 = vmatprep.subr.mxu0 0.0
        %1996 = vmatpush1.msra.mxu0 0.0
        %1997 = vmatprep.subr.mxu0 0.0
        %1998 = vmatpush1.msra.mxu0 0.0
        %1999 = vmatprep.subr.mxu0 0.0
        %2000 = vmatpush1.msra.mxu0 0.0
        %2001 = vmatprep.subr.mxu0 0.0
        %2002 = vmatpush1.msra.mxu0 0.0
        %2003 = vmatprep.subr.mxu0 0.0
        %2004 = vmatpush1.msra.mxu0 0.0
        %2005 = vmatprep.subr.mxu0 0.0
        %2006 = vmatpush1.msra.mxu0 %v1757
        %2007 = vmatprep.subr.mxu0 0.0
        %2008 = vmatpush1.msra.mxu0 %v1756
        %2009 = vmatprep.subr.mxu0 0.0
        %2010 = vmatpush2.msra.mxu0 0.0
        %2011 = vmatprep.subr.mxu0 0.0
        %2012 = vmatpush2.msra.mxu0 0.0
        %2013 = vmatprep.subr.mxu0 0.0
        %2014 = vmatpush2.msra.mxu0 0.0
        %2015 = vmatprep.subr.mxu0 0.0
        %2016 = vmatpush2.msra.mxu0 0.0
        %2017 = vmatprep.subr.mxu0 0.0
        %2018 = vmatpush2.msra.mxu0 0.0
        %2019 = vmatprep.subr.mxu0 0.0
        %2020 = vmatpush2.msra.mxu0 0.0
        %2021 = vmatprep.subr.mxu0 0.0
        %2022 = vmatpush2.msra.mxu0 0.0
        %2023 = vmatprep.subr.mxu0 0.0
        %2024 = vmatpush2.msra.mxu0 0.0
        %2025 = vmatprep.subr.mxu0 0.0
        %2026 = vmatpush2.msra.mxu0 0.0
        %2027 = vmatprep.subr.mxu0 0.0
        %2028 = vmatpush2.msra.mxu0 0.0
        %2029 = vmatprep.subr.mxu0 0.0
        %2030 = vmatpush2.msra.mxu0 0.0
        %2031 = vmatprep.subr.mxu0 0.0
        %2032 = vmatpush2.msra.mxu0 0.0
        %2033 = vmatprep.subr.mxu0 0.0
        %2034 = vmatpush2.msra.mxu0 0.0
        %2035 = vmatprep.subr.mxu0 0.0
        %2036 = vmatpush2.msra.mxu0 0.0
        %2037 = vmatprep.subr.mxu0 0.0
        %2038 = vmatpush2.msra.mxu0 0.0
        %2039 = vmatprep.subr.mxu0 0.0
        %2040 = vmatpush2.msra.mxu0 0.0
        %2041 = vmatprep.mubr.f32.mxu0 0.0
        %2042 = vmatmul.mubr.f32.gmra.mxu0 %v1975
        %v2043 = vpop.f32.mrf.mxu0
        %v2044 = vadd.f32 0.0, %v2043
        %v2045 = vpop.f32.mrf.mxu0
        %2046 = vdwg.mxu0
        %v2047 = vld [vmem:[%s670] sm:$0x3]
        %v2048 = vsub.f32 %v1901, %v2047
        %v2049 = vmul.f32 %v2048, %v2048
        %v2050 = vand.u32 2147483647, %v2048
        %s2051 = scalar_lea.vmem %s670, 2
        %v2052 = vld [vmem:[%s2051] sm:$0x3]
        %v2053 = vsub.f32 %v2044, %v2052
        %v2054 = vmul.f32 %v2053, %v2053
        %v2055 = vadd.f32 %v2049, %v2054
        %v2056 = vand.u32 2147483647, %v2053
        %v2057 = vadd.f32 %v2050, %v2056
        %v2058 = vrsqrt.pop %v2055
        %v2059 = vmul.f32 %v2055, %v2058
        %vm2060 = vcmp.eq.f32.partialorder %v2055, inf
        %v2061 = vsel %vm2060, %v2055, %v2059
        %vm2062 = vcmp.eq.f32.partialorder %v2055, 0.0
        %v2063 = vand.u32 %v2055, 2147483648
        %v2064 = vsel %vm2062, %v2063, %v2061
        %vm2065 = vcmask 9216
        %v2066 = vsel %vm2065, %v2064, 0.0
        %2067 = vadd.xlane.f32.xlu0 %v2066
        %v2068 = vpop.xlane.xlu0 %2067
        %v2069 = vrot.slane %v2068, 4
        %v2070 = vadd.f32 %v2068, %v2069
        %v2071 = vrot.slane %v2070, 2
        %v2072 = vadd.f32 %v2070, %v2071
        %v2073 = vrot.slane %v2072, 1
        %v2074 = vadd.f32 %v2072, %v2073
        %s2075 = vtos %v2074
        %s2076 = smul.f32 %s2075, 0.005
        %v2077 = vsel %vm2065, %v2057, 0.0
        %2078 = vadd.xlane.f32.xlu0 %v2077
        %v2079 = vpop.xlane.xlu0 %2078
        %v2080 = vrot.slane %v2079, 4
        %v2081 = vadd.f32 %v2079, %v2080
        %v2082 = vrot.slane %v2081, 2
        %v2083 = vadd.f32 %v2081, %v2082
        %v2084 = vrot.slane %v2083, 1
        %v2085 = vadd.f32 %v2083, %v2084
        %s2086 = vtos %v2085
        %s2087 = smul.f32 %s2086, 0.0025
        %s2088 = sadd.f32 %s1753, %s2087
        %s2089 = sadd.f32 %s1754, %s2076
        %v2090 = vld [vmem:[%s10] sm:$0x1]
        %v2091 = vld [vmem:[%s15] sm:$0xff]
        %v2092 = vld [vmem:[%s15 + $0x8] sm:$0xff]
        %v2094 = vsel %vm1056, %v2090, 0
        %2096 = vmatprep.subr.mxu0 0.0
        %2097 = vmatpush1.msra.mxu0 0.0
        %2098 = vmatprep.subr.mxu0 0.0
        %2099 = vmatpush1.msra.mxu0 0.0
        %2100 = vmatprep.subr.mxu0 0.0
        %2101 = vmatpush1.msra.mxu0 0.0
        %2102 = vmatprep.subr.mxu0 0.0
        %2103 = vmatpush1.msra.mxu0 0.0
        %2104 = vmatprep.subr.mxu0 0.0
        %2105 = vmatpush1.msra.mxu0 0.0
        %2106 = vmatprep.subr.mxu0 0.0
        %2107 = vmatpush1.msra.mxu0 0.0
        %2108 = vmatprep.subr.mxu0 0.0
        %2109 = vmatpush1.msra.mxu0 0.0
        %2110 = vmatprep.subr.mxu0 0.0
        %2111 = vmatpush1.msra.mxu0 0.0
        %2112 = vmatprep.subr.mxu0 0.0
        %2113 = vmatpush1.msra.mxu0 0.0
        %2114 = vmatprep.subr.mxu0 0.0
        %2115 = vmatpush1.msra.mxu0 0.0
        %2116 = vmatprep.subr.mxu0 0.0
        %2117 = vmatpush1.msra.mxu0 0.0
        %2118 = vmatprep.subr.mxu0 0.0
        %2119 = vmatpush1.msra.mxu0 0.0
        %2120 = vmatprep.subr.mxu0 0.0
        %2121 = vmatpush1.msra.mxu0 0.0
        %2122 = vmatprep.subr.mxu0 0.0
        %2123 = vmatpush1.msra.mxu0 0.0
        %2124 = vmatprep.subr.mxu0 0.0
        %2125 = vmatpush1.msra.mxu0 %v853
        %2126 = vmatprep.subr.mxu0 0.0
        %2127 = vmatpush1.msra.mxu0 %v848
        %2128 = vmatprep.subr.mxu0 0.0
        %2129 = vmatpush2.msra.mxu0 0.0
        %2130 = vmatprep.subr.mxu0 0.0
        %2131 = vmatpush2.msra.mxu0 0.0
        %2132 = vmatprep.subr.mxu0 0.0
        %2133 = vmatpush2.msra.mxu0 0.0
        %2134 = vmatprep.subr.mxu0 0.0
        %2135 = vmatpush2.msra.mxu0 0.0
        %2136 = vmatprep.subr.mxu0 0.0
        %2137 = vmatpush2.msra.mxu0 0.0
        %2138 = vmatprep.subr.mxu0 0.0
        %2139 = vmatpush2.msra.mxu0 0.0
        %2140 = vmatprep.subr.mxu0 0.0
        %2141 = vmatpush2.msra.mxu0 0.0
        %2142 = vmatprep.subr.mxu0 0.0
        %2143 = vmatpush2.msra.mxu0 0.0
        %2144 = vmatprep.subr.mxu0 0.0
        %2145 = vmatpush2.msra.mxu0 0.0
        %2146 = vmatprep.subr.mxu0 0.0
        %2147 = vmatpush2.msra.mxu0 0.0
        %2148 = vmatprep.subr.mxu0 0.0
        %2149 = vmatpush2.msra.mxu0 0.0
        %2150 = vmatprep.subr.mxu0 0.0
        %2151 = vmatpush2.msra.mxu0 0.0
        %2152 = vmatprep.subr.mxu0 0.0
        %2153 = vmatpush2.msra.mxu0 0.0
        %2154 = vmatprep.subr.mxu0 0.0
        %2155 = vmatpush2.msra.mxu0 0.0
        %2156 = vmatprep.subr.mxu0 0.0
        %2157 = vmatpush2.msra.mxu0 0.0
        %2158 = vmatprep.subr.mxu0 0.0
        %2159 = vmatpush2.msra.mxu0 0.0
        %2160 = vmatprep.mubr.f32.mxu0 0.0
        %2161 = vmatmul.mubr.f32.gmra.mxu0 %v2094
        %v2162 = vpop.f32.mrf.mxu0
        %v2163 = vadd.f32 0.0, %v2162
        %v2164 = vpop.f32.mrf.mxu0
        %2165 = vdwg.mxu0
        %v2167 = vsel %vm1056, %v2163, 0
        %2169 = vmatprep.subr.mxu0 0.0
        %2170 = vmatpush1.msra.mxu0 0.0
        %2171 = vmatprep.subr.mxu0 0.0
        %2172 = vmatpush1.msra.mxu0 0.0
        %2173 = vmatprep.subr.mxu0 0.0
        %2174 = vmatpush1.msra.mxu0 0.0
        %2175 = vmatprep.subr.mxu0 0.0
        %2176 = vmatpush1.msra.mxu0 0.0
        %2177 = vmatprep.subr.mxu0 0.0
        %2178 = vmatpush1.msra.mxu0 0.0
        %2179 = vmatprep.subr.mxu0 0.0
        %2180 = vmatpush1.msra.mxu0 0.0
        %2181 = vmatprep.subr.mxu0 0.0
        %2182 = vmatpush1.msra.mxu0 0.0
        %2183 = vmatprep.subr.mxu0 0.0
        %2184 = vmatpush1.msra.mxu0 0.0
        %2185 = vmatprep.subr.mxu0 0.0
        %2186 = vmatpush1.msra.mxu0 0.0
        %2187 = vmatprep.subr.mxu0 0.0
        %2188 = vmatpush1.msra.mxu0 0.0
        %2189 = vmatprep.subr.mxu0 0.0
        %2190 = vmatpush1.msra.mxu0 0.0
        %2191 = vmatprep.subr.mxu0 0.0
        %2192 = vmatpush1.msra.mxu0 0.0
        %2193 = vmatprep.subr.mxu0 0.0
        %2194 = vmatpush1.msra.mxu0 0.0
        %2195 = vmatprep.subr.mxu0 0.0
        %2196 = vmatpush1.msra.mxu0 0.0
        %2197 = vmatprep.subr.mxu0 0.0
        %2198 = vmatpush1.msra.mxu0 %v2092
        %2199 = vmatprep.subr.mxu0 0.0
        %2200 = vmatpush1.msra.mxu0 %v2091
        %2201 = vmatprep.subr.mxu0 0.0
        %2202 = vmatpush2.msra.mxu0 0.0
        %2203 = vmatprep.subr.mxu0 0.0
        %2204 = vmatpush2.msra.mxu0 0.0
        %2205 = vmatprep.subr.mxu0 0.0
        %2206 = vmatpush2.msra.mxu0 0.0
        %2207 = vmatprep.subr.mxu0 0.0
        %2208 = vmatpush2.msra.mxu0 0.0
        %2209 = vmatprep.subr.mxu0 0.0
        %2210 = vmatpush2.msra.mxu0 0.0
        %2211 = vmatprep.subr.mxu0 0.0
        %2212 = vmatpush2.msra.mxu0 0.0
        %2213 = vmatprep.subr.mxu0 0.0
        %2214 = vmatpush2.msra.mxu0 0.0
        %2215 = vmatprep.subr.mxu0 0.0
        %2216 = vmatpush2.msra.mxu0 0.0
        %2217 = vmatprep.subr.mxu0 0.0
        %2218 = vmatpush2.msra.mxu0 0.0
        %2219 = vmatprep.subr.mxu0 0.0
        %2220 = vmatpush2.msra.mxu0 0.0
        %2221 = vmatprep.subr.mxu0 0.0
        %2222 = vmatpush2.msra.mxu0 0.0
        %2223 = vmatprep.subr.mxu0 0.0
        %2224 = vmatpush2.msra.mxu0 0.0
        %2225 = vmatprep.subr.mxu0 0.0
        %2226 = vmatpush2.msra.mxu0 0.0
        %2227 = vmatprep.subr.mxu0 0.0
        %2228 = vmatpush2.msra.mxu0 0.0
        %2229 = vmatprep.subr.mxu0 0.0
        %2230 = vmatpush2.msra.mxu0 0.0
        %2231 = vmatprep.subr.mxu0 0.0
        %2232 = vmatpush2.msra.mxu0 0.0
        %2233 = vmatprep.mubr.f32.mxu0 0.0
        %2234 = vmatmul.mubr.f32.gmra.mxu0 %v2167
        %v2235 = vpop.f32.mrf.mxu0
        %v2236 = vadd.f32 0.0, %v2235
        %v2237 = vpop.f32.mrf.mxu0
        %2238 = vdwg.mxu0
        %2239 = vmatprep.subr.mxu0 0.0
        %2240 = vmatpush1.msra.mxu0 0.0
        %2241 = vmatprep.subr.mxu0 0.0
        %2242 = vmatpush1.msra.mxu0 0.0
        %2243 = vmatprep.subr.mxu0 0.0
        %2244 = vmatpush1.msra.mxu0 0.0
        %2245 = vmatprep.subr.mxu0 0.0
        %2246 = vmatpush1.msra.mxu0 0.0
        %2247 = vmatprep.subr.mxu0 0.0
        %2248 = vmatpush1.msra.mxu0 0.0
        %2249 = vmatprep.subr.mxu0 0.0
        %2250 = vmatpush1.msra.mxu0 0.0
        %2251 = vmatprep.subr.mxu0 0.0
        %2252 = vmatpush1.msra.mxu0 0.0
        %2253 = vmatprep.subr.mxu0 0.0
        %2254 = vmatpush1.msra.mxu0 0.0
        %2255 = vmatprep.subr.mxu0 0.0
        %2256 = vmatpush1.msra.mxu0 0.0
        %2257 = vmatprep.subr.mxu0 0.0
        %2258 = vmatpush1.msra.mxu0 0.0
        %2259 = vmatprep.subr.mxu0 0.0
        %2260 = vmatpush1.msra.mxu0 0.0
        %2261 = vmatprep.subr.mxu0 0.0
        %2262 = vmatpush1.msra.mxu0 0.0
        %2263 = vmatprep.subr.mxu0 0.0
        %2264 = vmatpush1.msra.mxu0 0.0
        %2265 = vmatprep.subr.mxu0 0.0
        %2266 = vmatpush1.msra.mxu0 0.0
        %2267 = vmatprep.subr.mxu0 0.0
        %2268 = vmatpush1.msra.mxu0 %v1018
        %2269 = vmatprep.subr.mxu0 0.0
        %2270 = vmatpush1.msra.mxu0 %v1013
        %2271 = vmatprep.subr.mxu0 0.0
        %2272 = vmatpush2.msra.mxu0 0.0
        %2273 = vmatprep.subr.mxu0 0.0
        %2274 = vmatpush2.msra.mxu0 0.0
        %2275 = vmatprep.subr.mxu0 0.0
        %2276 = vmatpush2.msra.mxu0 0.0
        %2277 = vmatprep.subr.mxu0 0.0
        %2278 = vmatpush2.msra.mxu0 0.0
        %2279 = vmatprep.subr.mxu0 0.0
        %2280 = vmatpush2.msra.mxu0 0.0
        %2281 = vmatprep.subr.mxu0 0.0
        %2282 = vmatpush2.msra.mxu0 0.0
        %2283 = vmatprep.subr.mxu0 0.0
        %2284 = vmatpush2.msra.mxu0 0.0
        %2285 = vmatprep.subr.mxu0 0.0
        %2286 = vmatpush2.msra.mxu0 0.0
        %2287 = vmatprep.subr.mxu0 0.0
        %2288 = vmatpush2.msra.mxu0 0.0
        %2289 = vmatprep.subr.mxu0 0.0
        %2290 = vmatpush2.msra.mxu0 0.0
        %2291 = vmatprep.subr.mxu0 0.0
        %2292 = vmatpush2.msra.mxu0 0.0
        %2293 = vmatprep.subr.mxu0 0.0
        %2294 = vmatpush2.msra.mxu0 0.0
        %2295 = vmatprep.subr.mxu0 0.0
        %2296 = vmatpush2.msra.mxu0 0.0
        %2297 = vmatprep.subr.mxu0 0.0
        %2298 = vmatpush2.msra.mxu0 0.0
        %2299 = vmatprep.subr.mxu0 0.0
        %2300 = vmatpush2.msra.mxu0 0.0
        %2301 = vmatprep.subr.mxu0 0.0
        %2302 = vmatpush2.msra.mxu0 0.0
        %2303 = vmatprep.mubr.f32.mxu0 0.0
        %2304 = vmatmul.mubr.f32.gmra.mxu0 %v2094
        %v2305 = vpop.f32.mrf.mxu0
        %v2306 = vadd.f32 0.0, %v2305
        %v2307 = vpop.f32.mrf.mxu0
        %2308 = vdwg.mxu0
        %v2310 = vsel %vm1056, %v2306, 0
        %2312 = vmatprep.subr.mxu0 0.0
        %2313 = vmatpush1.msra.mxu0 0.0
        %2314 = vmatprep.subr.mxu0 0.0
        %2315 = vmatpush1.msra.mxu0 0.0
        %2316 = vmatprep.subr.mxu0 0.0
        %2317 = vmatpush1.msra.mxu0 0.0
        %2318 = vmatprep.subr.mxu0 0.0
        %2319 = vmatpush1.msra.mxu0 0.0
        %2320 = vmatprep.subr.mxu0 0.0
        %2321 = vmatpush1.msra.mxu0 0.0
        %2322 = vmatprep.subr.mxu0 0.0
        %2323 = vmatpush1.msra.mxu0 0.0
        %2324 = vmatprep.subr.mxu0 0.0
        %2325 = vmatpush1.msra.mxu0 0.0
        %2326 = vmatprep.subr.mxu0 0.0
        %2327 = vmatpush1.msra.mxu0 0.0
        %2328 = vmatprep.subr.mxu0 0.0
        %2329 = vmatpush1.msra.mxu0 0.0
        %2330 = vmatprep.subr.mxu0 0.0
        %2331 = vmatpush1.msra.mxu0 0.0
        %2332 = vmatprep.subr.mxu0 0.0
        %2333 = vmatpush1.msra.mxu0 0.0
        %2334 = vmatprep.subr.mxu0 0.0
        %2335 = vmatpush1.msra.mxu0 0.0
        %2336 = vmatprep.subr.mxu0 0.0
        %2337 = vmatpush1.msra.mxu0 0.0
        %2338 = vmatprep.subr.mxu0 0.0
        %2339 = vmatpush1.msra.mxu0 0.0
        %2340 = vmatprep.subr.mxu0 0.0
        %2341 = vmatpush1.msra.mxu0 %v2092
        %2342 = vmatprep.subr.mxu0 0.0
        %2343 = vmatpush1.msra.mxu0 %v2091
        %2344 = vmatprep.subr.mxu0 0.0
        %2345 = vmatpush2.msra.mxu0 0.0
        %2346 = vmatprep.subr.mxu0 0.0
        %2347 = vmatpush2.msra.mxu0 0.0
        %2348 = vmatprep.subr.mxu0 0.0
        %2349 = vmatpush2.msra.mxu0 0.0
        %2350 = vmatprep.subr.mxu0 0.0
        %2351 = vmatpush2.msra.mxu0 0.0
        %2352 = vmatprep.subr.mxu0 0.0
        %2353 = vmatpush2.msra.mxu0 0.0
        %2354 = vmatprep.subr.mxu0 0.0
        %2355 = vmatpush2.msra.mxu0 0.0
        %2356 = vmatprep.subr.mxu0 0.0
        %2357 = vmatpush2.msra.mxu0 0.0
        %2358 = vmatprep.subr.mxu0 0.0
        %2359 = vmatpush2.msra.mxu0 0.0
        %2360 = vmatprep.subr.mxu0 0.0
        %2361 = vmatpush2.msra.mxu0 0.0
        %2362 = vmatprep.subr.mxu0 0.0
        %2363 = vmatpush2.msra.mxu0 0.0
        %2364 = vmatprep.subr.mxu0 0.0
        %2365 = vmatpush2.msra.mxu0 0.0
        %2366 = vmatprep.subr.mxu0 0.0
        %2367 = vmatpush2.msra.mxu0 0.0
        %2368 = vmatprep.subr.mxu0 0.0
        %2369 = vmatpush2.msra.mxu0 0.0
        %2370 = vmatprep.subr.mxu0 0.0
        %2371 = vmatpush2.msra.mxu0 0.0
        %2372 = vmatprep.subr.mxu0 0.0
        %2373 = vmatpush2.msra.mxu0 0.0
        %2374 = vmatprep.subr.mxu0 0.0
        %2375 = vmatpush2.msra.mxu0 0.0
        %2376 = vmatprep.mubr.f32.mxu0 0.0
        %2377 = vmatmul.mubr.f32.gmra.mxu0 %v2310
        %v2378 = vpop.f32.mrf.mxu0
        %v2379 = vadd.f32 0.0, %v2378
        %v2380 = vpop.f32.mrf.mxu0
        %2381 = vdwg.mxu0
        %v2382 = vld [vmem:[%s674] sm:$0x1]
        %v2383 = vsub.f32 %v2236, %v2382
        %v2384 = vmul.f32 %v2383, %v2383
        %v2385 = vand.u32 2147483647, %v2383
        %s2386 = scalar_lea.vmem %s674, 1
        %v2387 = vld [vmem:[%s2386] sm:$0x1]
        %v2388 = vsub.f32 %v2379, %v2387
        %v2389 = vmul.f32 %v2388, %v2388
        %v2390 = vadd.f32 %v2384, %v2389
        %v2391 = vand.u32 2147483647, %v2388
        %v2392 = vadd.f32 %v2385, %v2391
        %v2393 = vrsqrt.pop %v2390
        %v2394 = vmul.f32 %v2390, %v2393
        %vm2395 = vcmp.eq.f32.partialorder %v2390, inf
        %v2396 = vsel %vm2395, %v2390, %v2394
        %vm2397 = vcmp.eq.f32.partialorder %v2390, 0.0
        %v2398 = vand.u32 %v2390, 2147483648
        %v2399 = vsel %vm2397, %v2398, %v2396
        %v2400 = vadd.f32 %v2399, 0.0
        %s2401 = vtos %v2400
        %s2402 = smul.f32 %s2401, 0.01
        %v2403 = vadd.f32 %v2392, 0.0
        %s2404 = vtos %v2403
        %s2405 = smul.f32 %s2404, 0.005
        %s2406 = sadd.f32 %s2088, %s2405
        %s2407 = sadd.f32 %s2089, %s2402
        %v2408 = vstv %s2406
        %2409 = vst [vmem:[%s643] sm:$0xff] %v2408
        %v2410 = vstv %s2407
        %2411 = vst [vmem:[%s650] sm:$0xff] %v2410
        %s2412 = sand.u32 %s412, 1
        %s2413 = scalar_lea.sflag [#allocation4], %s2412
        %s2414 = sand.u32 %s412, 1
        %s2415 = smul.addr %s2414, 8
        %s2416 = scalar_lea.vmem [#allocation5], %s2415
        %s2417 = sand.u32 %s438, 1
        %s2418 = scalar_lea.sflag [#allocation7], %s2417
        %s2419 = sand.u32 %s438, 1
        %s2420 = smul.addr %s2419, 8
        %s2421 = scalar_lea.vmem [#allocation6], %s2420
        // Predicated region
        $region89: #{tpu_custom_call.1} parent=83 // pred_check
          %p2422 = pneg %p422
        $region90: #{tpu_custom_call.1} parent=83 // pred_check_branch
          %2424 = sbr.rel (%p2422) target = $region92
        $region91: #{tpu_custom_call.1} parent=83 // pred_region
          %s2426 = ssub.s32 128, 128
          %2427 = vsyncadd %s2413, %s2426
          %s2428 = smul.addr %s38, 128
          %s2429 = scalar_lea.hbm %s16, %s2428
          %s2431 = sshll.u32 %s2416, 4
          %s2432 = int_to_ptr.vmem [resolvable:$true] %s2431
          %2434 = dma.vmem_to_hbm [thread:$0]  %s2432, 128, %s2429, %s2413
        $region92: #{tpu_custom_call.1} parent=83 // pred_fallthru
          _
        // Predicated region
        $region93: #{tpu_custom_call.1} parent=83 // pred_check
          %p2435 = pneg %p448
        $region94: #{tpu_custom_call.1} parent=83 // pred_check_branch
          %2437 = sbr.rel (%p2435) target = $region96
        $region95: #{tpu_custom_call.1} parent=83 // pred_region
          %s2439 = ssub.s32 128, 128
          %2440 = vsyncadd %s2418, %s2439
          %s2441 = smul.addr %s38, 128
          %s2442 = scalar_lea.hbm %s17, %s2441
          %s2444 = sshll.u32 %s2421, 4
          %s2445 = int_to_ptr.vmem [resolvable:$true] %s2444
          %2447 = dma.vmem_to_hbm [thread:$0]  %s2445, 128, %s2442, %s2418
        $region96: #{tpu_custom_call.1} parent=83 // pred_fallthru
          _
      $region84: #{tpu_custom_call.1} parent=5 // pred_fallthru
        _
      %p2448 = scmp.le.s32.totalorder 2, %s33
      // Predicated region
      $region97: #{tpu_custom_call.1} parent=5 // pred_check
        %p2449 = pneg %p2448
      $region98: #{tpu_custom_call.1} parent=5 // pred_check_branch
        %2451 = sbr.rel (%p2449) target = $region100
      $region99: #{tpu_custom_call.1} parent=5 // pred_region
        %s2452 = ssub.s32 %s33, 2
        // Predicated region
        $region101: #{tpu_custom_call.1} parent=99 // pred_check
          %p2453 = pneg %p428
        $region102: #{tpu_custom_call.1} parent=99 // pred_check_branch
          %2455 = sbr.rel (%p2453) target = $region104
        $region103: #{tpu_custom_call.1} parent=99 // pred_region
          %s2456 = sand.u32 %s413, 1
          %s2457 = scalar_lea.sflag [#allocation4], %s2456
          %s2458 = sand.u32 %s413, 1
          %s2459 = smul.addr %s2458, 8
          %s2460 = scalar_lea.vmem [#allocation5], %s2459
          %2461 = dma.done %s2457, 128
        $region104: #{tpu_custom_call.1} parent=99 // pred_fallthru
          _
        // Predicated region
        $region105: #{tpu_custom_call.1} parent=99 // pred_check
          %p2462 = pneg %p454
        $region106: #{tpu_custom_call.1} parent=99 // pred_check_branch
          %2464 = sbr.rel (%p2462) target = $region108
        $region107: #{tpu_custom_call.1} parent=99 // pred_region
          %s2465 = sand.u32 %s439, 1
          %s2466 = scalar_lea.sflag [#allocation7], %s2465
          %s2467 = sand.u32 %s439, 1
          %s2468 = smul.addr %s2467, 8
          %s2469 = scalar_lea.vmem [#allocation6], %s2468
          %2470 = dma.done %s2466, 128
        $region108: #{tpu_custom_call.1} parent=99 // pred_fallthru
          _
      $region100: #{tpu_custom_call.1} parent=5 // pred_fallthru
        _
    $region6: #{tpu_custom_call.1} parent=1 // loop_footer
      %s37 = sadd.s32 1, %s33
    $region7: #{tpu_custom_call.1} parent=1 // loop_footer_branch
      %32 = sbr.rel target = $region3
    $region8: #{tpu_custom_call.1} parent=1 // loop_exit
      _
    %2471 = vsyncpa [#allocation3], 1
    %s2472 = scalar_lea.sflag [#allocation3], 1
    %2473 = vsyncpa %s2472, 1
    %2474 = vsyncpa [#allocation4], 1
    %s2475 = scalar_lea.sflag [#allocation4], 1
    %2476 = vsyncpa %s2475, 1
    %2477 = vsyncpa [#allocation7], 1
    %s2478 = scalar_lea.sflag [#allocation7], 1
    %2479 = vsyncpa %s2478, 1

</llo_original>
